<compile_context>
chip_gen: v7x
topology: tpu7x:2x2x1
jax: 0.10.0
libtpu: 0.0.40
codegen_flags: <defaults>
</compile_context>

<pallas_src>
import jax
import jax.numpy as jnp
from jax.experimental import pallas as pl
from jax.experimental.pallas import tpu as pltpu

HIDDEN = 128
LANE = 128


def kernelnet_kernel(t_ref, w1_ref, b1_ref, w2_ref, b2_ref, w3_ref, b3_ref, o_ref):
    """One row-tile of the MLP.

    t_ref : (TM, 1)      f32   time points (batch on sublanes)
    w1_ref: (1, 128)     f32   layer-1 weight row (in_features == 1)
    b1_ref: (1, 128)     f32
    w2_ref: (128, 128)   bf16  layer-2 weight (in, out) -- MXU operand
    b2_ref: (1, 128)     f32
    w3_ref: (1, 128)     f32   layer-3 weight laid out on lanes
    b3_ref: (1, 1)       f32   scalar in SMEM
    o_ref : (1, G, 128)  f32   lane-dense output slab, G = TM // 128
    """
    t = t_ref[...]                                              # (TM, 1) f32

    # Layer 1: Linear(1, 128) + ReLU.  K == 1, so the broadcast multiply-add is the
    # exact matmul (pure VPU work).
    h1 = jnp.maximum(t * w1_ref[...] + b1_ref[...], 0.0)        # (TM, 128) f32

    # Layer 2: Linear(128, 128) + ReLU.  bf16 operands into the MXU, f32 accumulate.
    # Bias add / ReLU stay in f32 on the VPU (v5e has no bf16 VPU path).
    h2 = jnp.dot(h1.astype(jnp.bfloat16), w2_ref[...],
                 preferred_element_type=jnp.float32)            # (TM, 128) f32
    h2 = jnp.maximum(h2 + b2_ref[...], 0.0)

    # Layer 3: Linear(128, 1) as VPU multiply + XLU transpose + sublane reduce.
    # Avoids a degenerate N=1 MXU matmul and lands the result lane-dense (batch on lanes).
    h2w = h2 * w3_ref[...]                                      # (TM, 128) f32
    b3 = b3_ref[0, 0]

    n_groups = o_ref.shape[1]                                   # TM // 128 (static)
    for g in range(n_groups):                                   # static, unrolled
        blk = h2w[g * LANE:(g + 1) * LANE, :]                   # (128, 128)
        row = jnp.sum(blk.T, axis=0, keepdims=True) + b3        # (1, 128), batch on lanes
        o_ref[0, pl.ds(g, 1), :] = row.astype(o_ref.dtype)


def kernelnet_forward(t, params, *, tm=1024):
    """t: (N, 1) float32. params: dict of w1,b1,w2,b2,w3,b3. Returns (N, 1) float32."""
    t = jnp.asarray(t, jnp.float32)
    N = t.shape[0]
    assert t.ndim == 2 and t.shape[1] == 1

    tm = max(LANE, (tm // LANE) * LANE)              # row tile, multiple of 128
    n_pad = ((N + tm - 1) // tm) * tm                # pad ragged batch
    if n_pad != N:
        t = jnp.pad(t, ((0, n_pad - N), (0, 0)))
    num_tiles = n_pad // tm
    n_groups = tm // LANE

    w1 = params["w1"].reshape(1, HIDDEN).astype(jnp.float32)
    b1 = params["b1"].reshape(1, HIDDEN).astype(jnp.float32)
    w2 = params["w2"].astype(jnp.bfloat16)                       # MXU operand, cast once
    b2 = params["b2"].reshape(1, HIDDEN).astype(jnp.float32)
    w3 = params["w3"].reshape(1, HIDDEN).astype(jnp.float32)     # (128,1) -> lane row
    b3 = params["b3"].reshape(1, 1).astype(jnp.float32)

    out3d = pl.pallas_call(
        kernelnet_kernel,
        out_shape=jax.ShapeDtypeStruct((num_tiles, n_groups, LANE), jnp.float32),
        grid_spec=pltpu.PrefetchScalarGridSpec(
            num_scalar_prefetch=0,
            grid=(num_tiles,),
            in_specs=[
                pl.BlockSpec((tm, 1), lambda i: (i, 0)),            # t tile
                pl.BlockSpec((1, HIDDEN), lambda i: (0, 0)),        # w1 (resident)
                pl.BlockSpec((1, HIDDEN), lambda i: (0, 0)),        # b1
                pl.BlockSpec((HIDDEN, HIDDEN), lambda i: (0, 0)),   # w2 (bf16, resident)
                pl.BlockSpec((1, HIDDEN), lambda i: (0, 0)),        # b2
                pl.BlockSpec((1, HIDDEN), lambda i: (0, 0)),        # w3 row
                pl.BlockSpec(memory_space=pltpu.MemorySpace.SMEM),  # b3 scalar
            ],
            out_specs=pl.BlockSpec((1, n_groups, LANE), lambda i: (i, 0, 0)),
        ),
        compiler_params=pltpu.CompilerParams(
            dimension_semantics=("parallel",)),      # shard tiles across TCs on v7x
    )(t, w1, b1, w2, b2, w3, b3)

    # Lane-dense slab back to the (N, 1) column expected by the module.
    return out3d.reshape(n_pad, 1)[:N]


def init_params(key):
    """Deterministic init mimicking PyTorch Linear default (uniform +/- 1/sqrt(fan_in))."""
    k1, k2, k3, k4, k5, k6 = jax.random.split(key, 6)

    def lin(kw, kb, fan_in, fan_out):
        bound = 1.0 / float(fan_in) ** 0.5
        w = jax.random.uniform(kw, (fan_in, fan_out), jnp.float32, -bound, bound)
        b = jax.random.uniform(kb, (1, fan_out), jnp.float32, -bound, bound)
        return w, b

    w1, b1 = lin(k1, k2, 1, HIDDEN)
    w2, b2 = lin(k3, k4, HIDDEN, HIDDEN)
    w3, b3 = lin(k5, k6, HIDDEN, 1)
    return {"w1": w1, "b1": b1, "w2": w2, "b2": b2, "w3": w3, "b3": b3}


def reference_forward(t, p):
    """JAX reference matching the kernel numerics (bf16 operands into layer 2)."""
    h1 = jnp.maximum(t @ p["w1"] + p["b1"], 0.0)
    h2 = jnp.dot(h1.astype(jnp.bfloat16), p["w2"].astype(jnp.bfloat16),
                 preferred_element_type=jnp.float32)
    h2 = jnp.maximum(h2 + p["b2"], 0.0)
    return h2 @ p["w3"] + p["b3"]


if __name__ == "__main__":
    key = jax.random.PRNGKey(0)
    kp, kt1 = jax.random.split(key)
    kt2 = jax.random.fold_in(kt1, 1)
    params = init_params(kp)

    # Case 1: two grid steps (tm=512) -> "parallel" axis can use both TCs on v7x.
    N1 = 1024
    t1 = jax.random.uniform(kt1, (N1, 1), jnp.float32)
    out1 = jax.block_until_ready(kernelnet_forward(t1, params, tm=512))
    ref1 = reference_forward(t1, params)
    assert out1.shape == (N1, 1)
    assert jnp.allclose(out1, ref1, atol=2e-3, rtol=2e-3), "mismatch vs reference (multi-tile)"

    # Case 2: N not a multiple of the tile -> padded tail with the default large tile.
    N2 = 200
    t2 = jax.random.uniform(kt2, (N2, 1), jnp.float32)
    out2 = jax.block_until_ready(kernelnet_forward(t2, params))
    ref2 = reference_forward(t2, params)
    assert out2.shape == (N2, 1)
    assert jnp.allclose(out2, ref2, atol=2e-3, rtol=2e-3), "mismatch vs reference (padded)"

    print("KERNEL_OK")
</pallas_src>

<mosaic_0001>
module attributes {stable_mosaic.version = 11 : i64} {
  func.func @kernelnet_kernel(%arg0: i32, %arg1: memref<512x1xf32, #tpu.memory_space<vmem>>, %arg2: memref<1x128xf32, #tpu.memory_space<vmem>>, %arg3: memref<1x128xf32, #tpu.memory_space<vmem>>, %arg4: memref<128x128xbf16, #tpu.memory_space<vmem>>, %arg5: memref<1x128xf32, #tpu.memory_space<vmem>>, %arg6: memref<1x128xf32, #tpu.memory_space<vmem>>, %arg7: memref<1x1xf32, #tpu.memory_space<smem>>, %arg8: memref<1x4x128xf32, #tpu.memory_space<vmem>>) attributes {dimension_semantics = [#tpu.dimension_semantics<parallel>], iteration_bounds = array<i64: 2>, scalar_prefetch = 0 : i64, scratch_operands = 0 : i64, tpu.core_type = #tpu.core_type<tc>, window_params = [{transform_indices = @transform_0, window_bounds = array<i64: 512, 1>}, {pipeline_mode = #tpu.pipeline_mode<synchronous>, transform_indices = @transform_1, window_bounds = array<i64: 1, 128>}, {pipeline_mode = #tpu.pipeline_mode<synchronous>, transform_indices = @transform_2, window_bounds = array<i64: 1, 128>}, {pipeline_mode = #tpu.pipeline_mode<synchronous>, transform_indices = @transform_3, window_bounds = array<i64: 128, 128>}, {pipeline_mode = #tpu.pipeline_mode<synchronous>, transform_indices = @transform_4, window_bounds = array<i64: 1, 128>}, {pipeline_mode = #tpu.pipeline_mode<synchronous>, transform_indices = @transform_5, window_bounds = array<i64: 1, 128>}, {transform_indices = @transform_6, window_bounds = array<i64: 1, 1>}, {transform_indices = @transform_7, window_bounds = array<i64: 1, 4, 128>}]} {
    %c0 = arith.constant 0 : index
    %c0_0 = arith.constant 0 : index
    %0 = vector.load %arg1[%c0, %c0_0] : memref<512x1xf32, #tpu.memory_space<vmem>>, vector<512x1xf32>
    %c0_1 = arith.constant 0 : index
    %c0_2 = arith.constant 0 : index
    %1 = vector.load %arg2[%c0_1, %c0_2] : memref<1x128xf32, #tpu.memory_space<vmem>>, vector<1x128xf32>
    %2 = vector.broadcast %0 : vector<512x1xf32> to vector<512x128xf32>
    %3 = vector.broadcast %1 : vector<1x128xf32> to vector<512x128xf32>
    %4 = arith.mulf %2, %3 : vector<512x128xf32>
    %c0_3 = arith.constant 0 : index
    %c0_4 = arith.constant 0 : index
    %5 = vector.load %arg3[%c0_3, %c0_4] : memref<1x128xf32, #tpu.memory_space<vmem>>, vector<1x128xf32>
    %6 = vector.broadcast %5 : vector<1x128xf32> to vector<512x128xf32>
    %7 = arith.addf %4, %6 : vector<512x128xf32>
    %cst = arith.constant 0.000000e+00 : f32
    %8 = vector.broadcast %cst : f32 to vector<512x128xf32>
    %9 = arith.maximumf %7, %8 : vector<512x128xf32>
    %10 = arith.truncf %9 : vector<512x128xf32> to vector<512x128xbf16>
    %c0_5 = arith.constant 0 : index
    %c0_6 = arith.constant 0 : index
    %11 = vector.load %arg4[%c0_5, %c0_6] : memref<128x128xbf16, #tpu.memory_space<vmem>>, vector<128x128xbf16>
    %cst_7 = arith.constant dense<0.000000e+00> : vector<512x128xf32>
    %12 = tpu.matmul %10, %11, %cst_7 {dimension_numbers = #tpu.dot_dimension_numbers<[1], [0], [0], [1], [0, 0, 1, 1], [], []>} : vector<512x128xbf16>, vector<128x128xbf16>, vector<512x128xf32> -> vector<512x128xf32>
    %c0_8 = arith.constant 0 : index
    %c0_9 = arith.constant 0 : index
    %13 = vector.load %arg5[%c0_8, %c0_9] : memref<1x128xf32, #tpu.memory_space<vmem>>, vector<1x128xf32>
    %14 = vector.broadcast %13 : vector<1x128xf32> to vector<512x128xf32>
    %15 = arith.addf %12, %14 : vector<512x128xf32>
    %cst_10 = arith.constant 0.000000e+00 : f32
    %16 = vector.broadcast %cst_10 : f32 to vector<512x128xf32>
    %17 = arith.maximumf %15, %16 : vector<512x128xf32>
    %c0_11 = arith.constant 0 : index
    %c0_12 = arith.constant 0 : index
    %18 = vector.load %arg6[%c0_11, %c0_12] : memref<1x128xf32, #tpu.memory_space<vmem>>, vector<1x128xf32>
    %19 = vector.broadcast %18 : vector<1x128xf32> to vector<512x128xf32>
    %20 = arith.mulf %17, %19 : vector<512x128xf32>
    %c0_13 = arith.constant 0 : index
    %c0_14 = arith.constant 0 : index
    %21 = memref.load %arg7[%c0_13, %c0_14] : memref<1x1xf32, #tpu.memory_space<smem>>
    %22 = vector.extract_strided_slice %20 {offsets = [0, 0], sizes = [128, 128], strides = [1, 1]} : vector<512x128xf32> to vector<128x128xf32>
    %23 = tpu.transpose %22, [1, 0] : vector<128x128xf32> -> vector<128x128xf32>
    %cst_15 = arith.constant dense<0.000000e+00> : vector<128xf32>
    %24 = vector.multi_reduction <add>, %23, %cst_15 [0] : vector<128x128xf32> to vector<128xf32>
    %25 = vector.shape_cast %24 : vector<128xf32> to vector<1x128xf32>
    %26 = vector.broadcast %21 : f32 to vector<1x128xf32>
    %27 = arith.addf %25, %26 : vector<1x128xf32>
    %c0_16 = arith.constant 0 : index
    %c0_17 = arith.constant 0 : index
    %c0_18 = arith.constant 0 : index
    %28 = vector.load %arg8[%c0_16, %c0_17, %c0_18] : memref<1x4x128xf32, #tpu.memory_space<vmem>>, vector<1x1x128xf32>
    %29 = vector.shape_cast %28 : vector<1x1x128xf32> to vector<1x128xf32>
    %30 = vector.shape_cast %27 : vector<1x128xf32> to vector<1x1x128xf32>
    tpu.vector_store %arg8[%c0_16, %c0_17, %c0_18], %30 {strides = array<i32>} : memref<1x4x128xf32, #tpu.memory_space<vmem>>, vector<1x1x128xf32>,
    %31 = vector.extract_strided_slice %20 {offsets = [128, 0], sizes = [128, 128], strides = [1, 1]} : vector<512x128xf32> to vector<128x128xf32>
    %32 = tpu.transpose %31, [1, 0] : vector<128x128xf32> -> vector<128x128xf32>
    %cst_19 = arith.constant dense<0.000000e+00> : vector<128xf32>
    %33 = vector.multi_reduction <add>, %32, %cst_19 [0] : vector<128x128xf32> to vector<128xf32>
    %34 = vector.shape_cast %33 : vector<128xf32> to vector<1x128xf32>
    %35 = vector.broadcast %21 : f32 to vector<1x128xf32>
    %36 = arith.addf %34, %35 : vector<1x128xf32>
    %c0_20 = arith.constant 0 : index
    %c1 = arith.constant 1 : index
    %c0_21 = arith.constant 0 : index
    %37 = vector.load %arg8[%c0_20, %c1, %c0_21] : memref<1x4x128xf32, #tpu.memory_space<vmem>>, vector<1x1x128xf32>
    %38 = vector.shape_cast %37 : vector<1x1x128xf32> to vector<1x128xf32>
    %39 = vector.shape_cast %36 : vector<1x128xf32> to vector<1x1x128xf32>
    tpu.vector_store %arg8[%c0_20, %c1, %c0_21], %39 {strides = array<i32>} : memref<1x4x128xf32, #tpu.memory_space<vmem>>, vector<1x1x128xf32>,
    %40 = vector.extract_strided_slice %20 {offsets = [256, 0], sizes = [128, 128], strides = [1, 1]} : vector<512x128xf32> to vector<128x128xf32>
    %41 = tpu.transpose %40, [1, 0] : vector<128x128xf32> -> vector<128x128xf32>
    %cst_22 = arith.constant dense<0.000000e+00> : vector<128xf32>
    %42 = vector.multi_reduction <add>, %41, %cst_22 [0] : vector<128x128xf32> to vector<128xf32>
    %43 = vector.shape_cast %42 : vector<128xf32> to vector<1x128xf32>
    %44 = vector.broadcast %21 : f32 to vector<1x128xf32>
    %45 = arith.addf %43, %44 : vector<1x128xf32>
    %c0_23 = arith.constant 0 : index
    %c2 = arith.constant 2 : index
    %c0_24 = arith.constant 0 : index
    %46 = vector.load %arg8[%c0_23, %c2, %c0_24] : memref<1x4x128xf32, #tpu.memory_space<vmem>>, vector<1x1x128xf32>
    %47 = vector.shape_cast %46 : vector<1x1x128xf32> to vector<1x128xf32>
    %48 = vector.shape_cast %45 : vector<1x128xf32> to vector<1x1x128xf32>
    tpu.vector_store %arg8[%c0_23, %c2, %c0_24], %48 {strides = array<i32>} : memref<1x4x128xf32, #tpu.memory_space<vmem>>, vector<1x1x128xf32>,
    %49 = vector.extract_strided_slice %20 {offsets = [384, 0], sizes = [128, 128], strides = [1, 1]} : vector<512x128xf32> to vector<128x128xf32>
    %50 = tpu.transpose %49, [1, 0] : vector<128x128xf32> -> vector<128x128xf32>
    %cst_25 = arith.constant dense<0.000000e+00> : vector<128xf32>
    %51 = vector.multi_reduction <add>, %50, %cst_25 [0] : vector<128x128xf32> to vector<128xf32>
    %52 = vector.shape_cast %51 : vector<128xf32> to vector<1x128xf32>
    %53 = vector.broadcast %21 : f32 to vector<1x128xf32>
    %54 = arith.addf %52, %53 : vector<1x128xf32>
    %c0_26 = arith.constant 0 : index
    %c3 = arith.constant 3 : index
    %c0_27 = arith.constant 0 : index
    %55 = vector.load %arg8[%c0_26, %c3, %c0_27] : memref<1x4x128xf32, #tpu.memory_space<vmem>>, vector<1x1x128xf32>
    %56 = vector.shape_cast %55 : vector<1x1x128xf32> to vector<1x128xf32>
    %57 = vector.shape_cast %54 : vector<1x128xf32> to vector<1x1x128xf32>
    tpu.vector_store %arg8[%c0_26, %c3, %c0_27], %57 {strides = array<i32>} : memref<1x4x128xf32, #tpu.memory_space<vmem>>, vector<1x1x128xf32>,
    return
  }
  func.func @transform_0(%arg0: i32) -> (i32, i32) {
    %c0_i32 = arith.constant 0 : i32
    %c0_i32_0 = arith.constant 0 : i32
    return %arg0, %c0_i32 : i32, i32
  }
  func.func @transform_1(%arg0: i32) -> (i32, i32) {
    %c0_i32 = arith.constant 0 : i32
    %c0_i32_0 = arith.constant 0 : i32
    %c0_i32_1 = arith.constant 0 : i32
    return %c0_i32, %c0_i32_0 : i32, i32
  }
  func.func @transform_2(%arg0: i32) -> (i32, i32) {
    %c0_i32 = arith.constant 0 : i32
    %c0_i32_0 = arith.constant 0 : i32
    %c0_i32_1 = arith.constant 0 : i32
    return %c0_i32, %c0_i32_0 : i32, i32
  }
  func.func @transform_3(%arg0: i32) -> (i32, i32) {
    %c0_i32 = arith.constant 0 : i32
    %c0_i32_0 = arith.constant 0 : i32
    %c0_i32_1 = arith.constant 0 : i32
    return %c0_i32, %c0_i32_0 : i32, i32
  }
  func.func @transform_4(%arg0: i32) -> (i32, i32) {
    %c0_i32 = arith.constant 0 : i32
    %c0_i32_0 = arith.constant 0 : i32
    %c0_i32_1 = arith.constant 0 : i32
    return %c0_i32, %c0_i32_0 : i32, i32
  }
  func.func @transform_5(%arg0: i32) -> (i32, i32) {
    %c0_i32 = arith.constant 0 : i32
    %c0_i32_0 = arith.constant 0 : i32
    %c0_i32_1 = arith.constant 0 : i32
    return %c0_i32, %c0_i32_0 : i32, i32
  }
  func.func @transform_6(%arg0: i32) -> (i32, i32) {
    %c0_i32 = arith.constant 0 : i32
    %c0_i32_0 = arith.constant 0 : i32
    %c0_i32_1 = arith.constant 0 : i32
    return %c0_i32, %c0_i32_0 : i32, i32
  }
  func.func @transform_7(%arg0: i32) -> (i32, i32, i32) {
    %c0_i32 = arith.constant 0 : i32
    %c0_i32_0 = arith.constant 0 : i32
    %c0_i32_1 = arith.constant 0 : i32
    return %arg0, %c0_i32, %c0_i32_0 : i32, i32, i32
  }
}

</mosaic_0001>

<llo_original>
// kernel: tpu_custom_call.1
$region0: #{tpu_custom_call.1}
  #allocation0 [shape = 'u32[]', space=smem, size = 0x4, offset = 0x4, fixed_abs, tag = 'smem constant byte address 0x4 - core index']
  #allocation1 [shape = 'u32[144,128]{1,0:T(1,128)}', space=vmem, size = 0x12000, scoped, tag = 'internal scratch']
  #allocation2 [shape = 'f32[1,1]{1,0:T(1,128)S(6)}', space=smem, size = 0x200, scoped, tag = 'scoped memory for tpu_custom_call.1']
  %s0 = inlined_call_operand.vmem [shape: f32[1024,1], index: 0, kind: input, shape index: {}]
  %s1 = inlined_call_operand.vmem [shape: f32[1,128], index: 1, kind: input, shape index: {}]
  %s2 = inlined_call_operand.vmem [shape: f32[1,128], index: 2, kind: input, shape index: {}]
  %s3 = inlined_call_operand.vmem [shape: bf16[128,128], index: 3, kind: input, shape index: {}]
  %s4 = inlined_call_operand.vmem [shape: f32[1,128], index: 4, kind: input, shape index: {}]
  %s5 = inlined_call_operand.vmem [shape: f32[1,128], index: 5, kind: input, shape index: {}]
  %s6 = inlined_call_operand.<no memory space> [shape: f32[1,1], index: 6, kind: input, shape index: {}]
  %s7 = inlined_call_operand.hbm [shape: f32[2,4,128], index: 7, kind: output, shape index: {}]
  %s8 = sld [smem:[#allocation0]]
  $region61: #{tpu_custom_call.1} parent=0
    _
  %s10 = ssub.s32 1, %s8
  %s11 = scalar_select 0, %s10, %s8
  %12 = sst [smem:[#allocation2]] %s6
  $region1: #{tpu_custom_call.1} parent=0
    #allocation3 [shape = 'u8[4096]{0}', space=vmem, size = 0x1000, scoped, tag = 'output window, operand 0']
    #allocation4 [shape = 's32[2]{0}', space=sflag, size = 0x8, scoped, tag = 'scoped memory for tpu_custom_call.1']
    %13 = vsyncpa [#allocation4], 0
    %s14 = scalar_lea.sflag [#allocation4], 1
    %15 = vsyncpa %s14, 0
    loop: start=0, step=1, limit=4
    $region2: #{tpu_custom_call.1} parent=1 // loop_pre_header
      _
    $region3: #{tpu_custom_call.1} parent=1 // loop_header
      %s17 = sphi 0, %s21
      %p18 = scmp.ge.s32.totalorder %s17, 4
      %s27 = sphi 0, %s29
      %s30 = sphi 0, %s27
      %s31 = sphi 0, %s30
      %s47 = sphi 0, %s31
      %s51 = sphi 0, %s51
      %s53 = sphi 0, %s51
      %s54 = sphi 0, %s53
      %s68 = sphi 0, %s54
      %s72 = sphi 0, %s72
      %s74 = sphi 0, %s72
      %s75 = sphi 0, %s74
      %s89 = sphi 0, %s75
      %s93 = sphi 0, %s93
      %s95 = sphi 0, %s93
      %s96 = sphi 0, %s95
      %s110 = sphi 0, %s96
      %s114 = sphi 0, %s114
      %s116 = sphi 0, %s114
      %s117 = sphi 0, %s116
      %s131 = sphi 0, %s117
      %s135 = sphi 0, %s135
      %s137 = sphi 0, %s135
      %s138 = sphi 0, %s137
      %s152 = sphi 0, %s138
      %s156 = sphi 0, %s156
      %s158 = sphi 0, %s156
      %s159 = sphi 0, %s158
      %s173 = sphi 0, %s159
      %s179 = sphi 0, %s181
      %s182 = sphi 0, %s179
      %s183 = sphi 0, %s182
      %s199 = sphi 0, %s183
    $region4: #{tpu_custom_call.1} parent=1 // loop_header_branch
      %20 = sbr.rel (%p18) target = $region8
    $region5: #{tpu_custom_call.1} parent=1 // loop_body
      %s22 = ssub.s32 %s17, 1
      %s23 = ssub.s32 %s17, 2
      %s24 = sadd.s32 %s17, 1
      %s25 = ssub.s32 %s17, %s24
      %p26 = scmp.eq.s32.totalorder %s25, 0
      %s28 = sadd.s32 %s27, 1
      %s29 = scalar_select %p26, %s27, %s28
      %p32 = pneg %p26
      %p33 = scmp.eq.s32.totalorder %s17, 1
      %p34 = por %p32, %p33
      %p35 = scmp.ne.s32.totalorder %s27, %s30
      %p36 = scmp.eq.s32.totalorder %s17, 0
      %p37 = por %p35, %p36
      %p38 = scmp.ne.s32.totalorder %s27, %s30
      %p39 = scmp.eq.s32.totalorder %s22, 1
      %p40 = por %p38, %p39
      %p41 = scmp.ne.s32.totalorder %s30, %s31
      %p42 = scmp.eq.s32.totalorder %s22, 0
      %p43 = por %p41, %p42
      %p44 = scmp.ne.s32.totalorder %s30, %s31
      %p45 = scmp.eq.s32.totalorder %s23, 1
      %p46 = por %p44, %p45
      %p48 = scmp.ne.s32.totalorder %s31, %s47
      %p49 = scmp.eq.s32.totalorder %s23, 0
      %p50 = por %p48, %p49
      %s52 = sadd.s32 %s51, 1
      %p55 = scmp.eq.s32.totalorder %s17, 1
      %p56 = scmp.ne.s32.totalorder %s51, %s53
      %p57 = scmp.eq.s32.totalorder %s17, 0
      %p58 = por %p56, %p57
      %p59 = scmp.ne.s32.totalorder %s51, %s53
      %p60 = scmp.eq.s32.totalorder %s22, 1
      %p61 = por %p59, %p60
      %p62 = scmp.ne.s32.totalorder %s53, %s54
      %p63 = scmp.eq.s32.totalorder %s22, 0
      %p64 = por %p62, %p63
      %p65 = scmp.ne.s32.totalorder %s53, %s54
      %p66 = scmp.eq.s32.totalorder %s23, 1
      %p67 = por %p65, %p66
      %p69 = scmp.ne.s32.totalorder %s54, %s68
      %p70 = scmp.eq.s32.totalorder %s23, 0
      %p71 = por %p69, %p70
      %s73 = sadd.s32 %s72, 1
      %p76 = scmp.eq.s32.totalorder %s17, 1
      %p77 = scmp.ne.s32.totalorder %s72, %s74
      %p78 = scmp.eq.s32.totalorder %s17, 0
      %p79 = por %p77, %p78
      %p80 = scmp.ne.s32.totalorder %s72, %s74
      %p81 = scmp.eq.s32.totalorder %s22, 1
      %p82 = por %p80, %p81
      %p83 = scmp.ne.s32.totalorder %s74, %s75
      %p84 = scmp.eq.s32.totalorder %s22, 0
      %p85 = por %p83, %p84
      %p86 = scmp.ne.s32.totalorder %s74, %s75
      %p87 = scmp.eq.s32.totalorder %s23, 1
      %p88 = por %p86, %p87
      %p90 = scmp.ne.s32.totalorder %s75, %s89
      %p91 = scmp.eq.s32.totalorder %s23, 0
      %p92 = por %p90, %p91
      %s94 = sadd.s32 %s93, 1
      %p97 = scmp.eq.s32.totalorder %s17, 1
      %p98 = scmp.ne.s32.totalorder %s93, %s95
      %p99 = scmp.eq.s32.totalorder %s17, 0
      %p100 = por %p98, %p99
      %p101 = scmp.ne.s32.totalorder %s93, %s95
      %p102 = scmp.eq.s32.totalorder %s22, 1
      %p103 = por %p101, %p102
      %p104 = scmp.ne.s32.totalorder %s95, %s96
      %p105 = scmp.eq.s32.totalorder %s22, 0
      %p106 = por %p104, %p105
      %p107 = scmp.ne.s32.totalorder %s95, %s96
      %p108 = scmp.eq.s32.totalorder %s23, 1
      %p109 = por %p107, %p108
      %p111 = scmp.ne.s32.totalorder %s96, %s110
      %p112 = scmp.eq.s32.totalorder %s23, 0
      %p113 = por %p111, %p112
      %s115 = sadd.s32 %s114, 1
      %p118 = scmp.eq.s32.totalorder %s17, 1
      %p119 = scmp.ne.s32.totalorder %s114, %s116
      %p120 = scmp.eq.s32.totalorder %s17, 0
      %p121 = por %p119, %p120
      %p122 = scmp.ne.s32.totalorder %s114, %s116
      %p123 = scmp.eq.s32.totalorder %s22, 1
      %p124 = por %p122, %p123
      %p125 = scmp.ne.s32.totalorder %s116, %s117
      %p126 = scmp.eq.s32.totalorder %s22, 0
      %p127 = por %p125, %p126
      %p128 = scmp.ne.s32.totalorder %s116, %s117
      %p129 = scmp.eq.s32.totalorder %s23, 1
      %p130 = por %p128, %p129
      %p132 = scmp.ne.s32.totalorder %s117, %s131
      %p133 = scmp.eq.s32.totalorder %s23, 0
      %p134 = por %p132, %p133
      %s136 = sadd.s32 %s135, 1
      %p139 = scmp.eq.s32.totalorder %s17, 1
      %p140 = scmp.ne.s32.totalorder %s135, %s137
      %p141 = scmp.eq.s32.totalorder %s17, 0
      %p142 = por %p140, %p141
      %p143 = scmp.ne.s32.totalorder %s135, %s137
      %p144 = scmp.eq.s32.totalorder %s22, 1
      %p145 = por %p143, %p144
      %p146 = scmp.ne.s32.totalorder %s137, %s138
      %p147 = scmp.eq.s32.totalorder %s22, 0
      %p148 = por %p146, %p147
      %p149 = scmp.ne.s32.totalorder %s137, %s138
      %p150 = scmp.eq.s32.totalorder %s23, 1
      %p151 = por %p149, %p150
      %p153 = scmp.ne.s32.totalorder %s138, %s152
      %p154 = scmp.eq.s32.totalorder %s23, 0
      %p155 = por %p153, %p154
      %s157 = sadd.s32 %s156, 1
      %p160 = scmp.eq.s32.totalorder %s17, 1
      %p161 = scmp.ne.s32.totalorder %s156, %s158
      %p162 = scmp.eq.s32.totalorder %s17, 0
      %p163 = por %p161, %p162
      %p164 = scmp.ne.s32.totalorder %s156, %s158
      %p165 = scmp.eq.s32.totalorder %s22, 1
      %p166 = por %p164, %p165
      %p167 = scmp.ne.s32.totalorder %s158, %s159
      %p168 = scmp.eq.s32.totalorder %s22, 0
      %p169 = por %p167, %p168
      %p170 = scmp.ne.s32.totalorder %s158, %s159
      %p171 = scmp.eq.s32.totalorder %s23, 1
      %p172 = por %p170, %p171
      %p174 = scmp.ne.s32.totalorder %s159, %s173
      %p175 = scmp.eq.s32.totalorder %s23, 0
      %p176 = por %p174, %p175
      %s177 = ssub.s32 %s17, %s24
      %p178 = scmp.eq.s32.totalorder %s177, 0
      %s180 = sadd.s32 %s179, 1
      %s181 = scalar_select %p178, %s179, %s180
      %p184 = pneg %p178
      %p185 = scmp.eq.s32.totalorder %s17, 1
      %p186 = por %p184, %p185
      %p187 = scmp.ne.s32.totalorder %s179, %s182
      %p188 = scmp.eq.s32.totalorder %s17, 0
      %p189 = por %p187, %p188
      %p190 = scmp.ne.s32.totalorder %s179, %s182
      %p191 = scmp.eq.s32.totalorder %s22, 1
      %p192 = por %p190, %p191
      %p193 = scmp.ne.s32.totalorder %s182, %s183
      %p194 = scmp.eq.s32.totalorder %s22, 0
      %p195 = por %p193, %p194
      %p196 = scmp.ne.s32.totalorder %s182, %s183
      %p197 = scmp.eq.s32.totalorder %s23, 1
      %p198 = por %p196, %p197
      %p200 = scmp.ne.s32.totalorder %s183, %s199
      %p201 = scmp.eq.s32.totalorder %s23, 0
      %p202 = por %p200, %p201
      %p203 = scmp.le.s32.totalorder 1, %s17
      %p204 = scmp.lt.s32.totalorder %s17, 3
      %p205 = pnand %p203, %p204
      %p206 = pneg %p205
      // Predicated region
      $region9: #{tpu_custom_call.1} parent=5 // pred_check
        _
      $region10: #{tpu_custom_call.1} parent=5 // pred_check_branch
        %208 = sbr.rel (%p205) target = $region12
      $region11: #{tpu_custom_call.1} parent=5 // pred_region
        %s209 = ssub.s32 %s17, 1
        // Predicated region
        $region13: #{tpu_custom_call.1} parent=11 // pred_check
          %p210 = pneg %p64
        $region14: #{tpu_custom_call.1} parent=11 // pred_check_branch
          %212 = sbr.rel (%p210) target = $region16
        $region15: #{tpu_custom_call.1} parent=11 // pred_region
          _
        $region16: #{tpu_custom_call.1} parent=11 // pred_fallthru
          _
        // Predicated region
        $region17: #{tpu_custom_call.1} parent=11 // pred_check
          %p213 = pneg %p85
        $region18: #{tpu_custom_call.1} parent=11 // pred_check_branch
          %215 = sbr.rel (%p213) target = $region20
        $region19: #{tpu_custom_call.1} parent=11 // pred_region
          _
        $region20: #{tpu_custom_call.1} parent=11 // pred_fallthru
          _
        // Predicated region
        $region21: #{tpu_custom_call.1} parent=11 // pred_check
          %p216 = pneg %p106
        $region22: #{tpu_custom_call.1} parent=11 // pred_check_branch
          %218 = sbr.rel (%p216) target = $region24
        $region23: #{tpu_custom_call.1} parent=11 // pred_region
          _
        $region24: #{tpu_custom_call.1} parent=11 // pred_fallthru
          _
        // Predicated region
        $region25: #{tpu_custom_call.1} parent=11 // pred_check
          %p219 = pneg %p127
        $region26: #{tpu_custom_call.1} parent=11 // pred_check_branch
          %221 = sbr.rel (%p219) target = $region28
        $region27: #{tpu_custom_call.1} parent=11 // pred_region
          _
        $region28: #{tpu_custom_call.1} parent=11 // pred_fallthru
          _
        // Predicated region
        $region29: #{tpu_custom_call.1} parent=11 // pred_check
          %p222 = pneg %p148
        $region30: #{tpu_custom_call.1} parent=11 // pred_check_branch
          %224 = sbr.rel (%p222) target = $region32
        $region31: #{tpu_custom_call.1} parent=11 // pred_region
          _
        $region32: #{tpu_custom_call.1} parent=11 // pred_fallthru
          _
        // Predicated region
        $region33: #{tpu_custom_call.1} parent=11 // pred_check
          %p225 = pneg %p169
        $region34: #{tpu_custom_call.1} parent=11 // pred_check_branch
          %227 = sbr.rel (%p225) target = $region36
        $region35: #{tpu_custom_call.1} parent=11 // pred_region
          _
        $region36: #{tpu_custom_call.1} parent=11 // pred_fallthru
          _
      $region12: #{tpu_custom_call.1} parent=5 // pred_fallthru
        _
      %p228 = scmp.lt.s32.totalorder %s17, 2
      // Predicated region
      $region37: #{tpu_custom_call.1} parent=5 // pred_check
        %p229 = pneg %p228
      $region38: #{tpu_custom_call.1} parent=5 // pred_check_branch
        %231 = sbr.rel (%p229) target = $region40
      $region39: #{tpu_custom_call.1} parent=5 // pred_region
        // Predicated region
        $region41: #{tpu_custom_call.1} parent=39 // pred_check
          %p232 = pneg %p37
        $region42: #{tpu_custom_call.1} parent=39 // pred_check_branch
          %234 = sbr.rel (%p232) target = $region44
        $region43: #{tpu_custom_call.1} parent=39 // pred_region
          %s235 = smul.u32 64, %s17
          %p236 = scmp.lt.s32.totalorder %s235, 127
          %s237 = scalar_select %p236, %s235, 127
          %s238 = smul.addr %s237, 8
          %s239 = scalar_lea.vmem %s0, %s238
          %s240 = smul.u32 64, %s17
        $region44: #{tpu_custom_call.1} parent=39 // pred_fallthru
          _
      $region40: #{tpu_custom_call.1} parent=5 // pred_fallthru
        _
      %p241 = scmp.le.s32.totalorder 1, %s17
      %p242 = scmp.lt.s32.totalorder %s17, 3
      %p243 = pnand %p241, %p242
      %p244 = pneg %p243
      // Predicated region
      $region45: #{tpu_custom_call.1} parent=5 // pred_check
        _
      $region46: #{tpu_custom_call.1} parent=5 // pred_check_branch
        %246 = sbr.rel (%p243) target = $region48
      $region47: #{tpu_custom_call.1} parent=5 // pred_region
        %s247 = ssub.s32 %s17, 1
        %s248 = smul.u32 64, %s22
        %p249 = scmp.lt.s32.totalorder %s248, 127
        %s250 = scalar_select %p249, %s248, 127
        %s251 = smul.addr %s250, 8
        %s252 = scalar_lea.vmem %s0, %s251
        %p253 = pneg %p43
        %p254 = pneg %p40
        %p255 = pneg %p64
        %p256 = pneg %p61
        %p257 = pneg %p85
        %p258 = pneg %p82
        %p259 = pneg %p106
        %p260 = pneg %p103
        %p261 = pneg %p127
        %p262 = pneg %p124
        %p263 = pneg %p148
        %p264 = pneg %p145
        %p265 = pneg %p169
        %p266 = pneg %p166
        %p267 = pneg %p195
        %p268 = pneg %p192
        %s269 = sand.u32 %s182, 1
        %s270 = scalar_lea.sflag [#allocation4], %s269
        %s271 = sand.u32 %s182, 1
        %s272 = smul.addr %s271, 4
        %s273 = scalar_lea.vmem [#allocation3], %s272
        %s274 = smul.u32 64, %s22
        %p275 = scmp.lt.s32.totalorder %s274, 127
        %s276 = scalar_select %p275, %s274, 127
        %s277 = smul.addr %s276, 8
        %s278 = scalar_lea.vmem %s0, %s277
        %s279 = smul.u32 64, %s22
        %v281 = vld [vmem:[%s278] sm:$0xff]
        %v282 = vld [vmem:[%s278 + $0x8] sm:$0xff]
        %v283 = vld [vmem:[%s278 + $0x10] sm:$0xff]
        %v284 = vld [vmem:[%s278 + $0x18] sm:$0xff]
        %v285 = vld [vmem:[%s278 + $0x20] sm:$0xff]
        %v286 = vld [vmem:[%s278 + $0x28] sm:$0xff]
        %v287 = vld [vmem:[%s278 + $0x30] sm:$0xff]
        %v288 = vld [vmem:[%s278 + $0x38] sm:$0xff]
        %v289 = vld [vmem:[%s278 + $0x40] sm:$0xff]
        %v290 = vld [vmem:[%s278 + $0x48] sm:$0xff]
        %v291 = vld [vmem:[%s278 + $0x50] sm:$0xff]
        %v292 = vld [vmem:[%s278 + $0x58] sm:$0xff]
        %v293 = vld [vmem:[%s278 + $0x60] sm:$0xff]
        %v294 = vld [vmem:[%s278 + $0x68] sm:$0xff]
        %v295 = vld [vmem:[%s278 + $0x70] sm:$0xff]
        %v296 = vld [vmem:[%s278 + $0x78] sm:$0xff]
        %v297 = vld [vmem:[%s278 + $0x80] sm:$0xff]
        %v298 = vld [vmem:[%s278 + $0x88] sm:$0xff]
        %v299 = vld [vmem:[%s278 + $0x90] sm:$0xff]
        %v300 = vld [vmem:[%s278 + $0x98] sm:$0xff]
        %v301 = vld [vmem:[%s278 + $0xa0] sm:$0xff]
        %v302 = vld [vmem:[%s278 + $0xa8] sm:$0xff]
        %v303 = vld [vmem:[%s278 + $0xb0] sm:$0xff]
        %v304 = vld [vmem:[%s278 + $0xb8] sm:$0xff]
        %v305 = vld [vmem:[%s278 + $0xc0] sm:$0xff]
        %v306 = vld [vmem:[%s278 + $0xc8] sm:$0xff]
        %v307 = vld [vmem:[%s278 + $0xd0] sm:$0xff]
        %v308 = vld [vmem:[%s278 + $0xd8] sm:$0xff]
        %v309 = vld [vmem:[%s278 + $0xe0] sm:$0xff]
        %v310 = vld [vmem:[%s278 + $0xe8] sm:$0xff]
        %v311 = vld [vmem:[%s278 + $0xf0] sm:$0xff]
        %v312 = vld [vmem:[%s278 + $0xf8] sm:$0xff]
        %v313 = vld [vmem:[%s278 + $0x100] sm:$0xff]
        %v314 = vld [vmem:[%s278 + $0x108] sm:$0xff]
        %v315 = vld [vmem:[%s278 + $0x110] sm:$0xff]
        %v316 = vld [vmem:[%s278 + $0x118] sm:$0xff]
        %v317 = vld [vmem:[%s278 + $0x120] sm:$0xff]
        %v318 = vld [vmem:[%s278 + $0x128] sm:$0xff]
        %v319 = vld [vmem:[%s278 + $0x130] sm:$0xff]
        %v320 = vld [vmem:[%s278 + $0x138] sm:$0xff]
        %v321 = vld [vmem:[%s278 + $0x140] sm:$0xff]
        %v322 = vld [vmem:[%s278 + $0x148] sm:$0xff]
        %v323 = vld [vmem:[%s278 + $0x150] sm:$0xff]
        %v324 = vld [vmem:[%s278 + $0x158] sm:$0xff]
        %v325 = vld [vmem:[%s278 + $0x160] sm:$0xff]
        %v326 = vld [vmem:[%s278 + $0x168] sm:$0xff]
        %v327 = vld [vmem:[%s278 + $0x170] sm:$0xff]
        %v328 = vld [vmem:[%s278 + $0x178] sm:$0xff]
        %v329 = vld [vmem:[%s278 + $0x180] sm:$0xff]
        %v330 = vld [vmem:[%s278 + $0x188] sm:$0xff]
        %v331 = vld [vmem:[%s278 + $0x190] sm:$0xff]
        %v332 = vld [vmem:[%s278 + $0x198] sm:$0xff]
        %v333 = vld [vmem:[%s278 + $0x1a0] sm:$0xff]
        %v334 = vld [vmem:[%s278 + $0x1a8] sm:$0xff]
        %v335 = vld [vmem:[%s278 + $0x1b0] sm:$0xff]
        %v336 = vld [vmem:[%s278 + $0x1b8] sm:$0xff]
        %v337 = vld [vmem:[%s278 + $0x1c0] sm:$0xff]
        %v338 = vld [vmem:[%s278 + $0x1c8] sm:$0xff]
        %v339 = vld [vmem:[%s278 + $0x1d0] sm:$0xff]
        %v340 = vld [vmem:[%s278 + $0x1d8] sm:$0xff]
        %v341 = vld [vmem:[%s278 + $0x1e0] sm:$0xff]
        %v342 = vld [vmem:[%s278 + $0x1e8] sm:$0xff]
        %v343 = vld [vmem:[%s278 + $0x1f0] sm:$0xff]
        %v344 = vld [vmem:[%s278 + $0x1f8] sm:$0xff]
        %v345 = vld [vmem:[%s1] sm:$0x1]
        %347 = vset.pattern.permute.xlu0 0
        %348 = vperm.xlu0 %347, %v281
        %v349 = vpop.permute.xlu0 %348
        %352 = vset.pattern.permute.xlu0 0
        %353 = vperm.xlu0 %352, %v282
        %v354 = vpop.permute.xlu0 %353
        %357 = vset.pattern.permute.xlu0 0
        %358 = vperm.xlu0 %357, %v283
        %v359 = vpop.permute.xlu0 %358
        %362 = vset.pattern.permute.xlu0 0
        %363 = vperm.xlu0 %362, %v284
        %v364 = vpop.permute.xlu0 %363
        %367 = vset.pattern.permute.xlu0 0
        %368 = vperm.xlu0 %367, %v285
        %v369 = vpop.permute.xlu0 %368
        %372 = vset.pattern.permute.xlu0 0
        %373 = vperm.xlu0 %372, %v286
        %v374 = vpop.permute.xlu0 %373
        %377 = vset.pattern.permute.xlu0 0
        %378 = vperm.xlu0 %377, %v287
        %v379 = vpop.permute.xlu0 %378
        %382 = vset.pattern.permute.xlu0 0
        %383 = vperm.xlu0 %382, %v288
        %v384 = vpop.permute.xlu0 %383
        %387 = vset.pattern.permute.xlu0 0
        %388 = vperm.xlu0 %387, %v289
        %v389 = vpop.permute.xlu0 %388
        %392 = vset.pattern.permute.xlu0 0
        %393 = vperm.xlu0 %392, %v290
        %v394 = vpop.permute.xlu0 %393
        %397 = vset.pattern.permute.xlu0 0
        %398 = vperm.xlu0 %397, %v291
        %v399 = vpop.permute.xlu0 %398
        %402 = vset.pattern.permute.xlu0 0
        %403 = vperm.xlu0 %402, %v292
        %v404 = vpop.permute.xlu0 %403
        %407 = vset.pattern.permute.xlu0 0
        %408 = vperm.xlu0 %407, %v293
        %v409 = vpop.permute.xlu0 %408
        %412 = vset.pattern.permute.xlu0 0
        %413 = vperm.xlu0 %412, %v294
        %v414 = vpop.permute.xlu0 %413
        %417 = vset.pattern.permute.xlu0 0
        %418 = vperm.xlu0 %417, %v295
        %v419 = vpop.permute.xlu0 %418
        %422 = vset.pattern.permute.xlu0 0
        %423 = vperm.xlu0 %422, %v296
        %v424 = vpop.permute.xlu0 %423
        %427 = vset.pattern.permute.xlu0 0
        %428 = vperm.xlu0 %427, %v297
        %v429 = vpop.permute.xlu0 %428
        %432 = vset.pattern.permute.xlu0 0
        %433 = vperm.xlu0 %432, %v298
        %v434 = vpop.permute.xlu0 %433
        %437 = vset.pattern.permute.xlu0 0
        %438 = vperm.xlu0 %437, %v299
        %v439 = vpop.permute.xlu0 %438
        %442 = vset.pattern.permute.xlu0 0
        %443 = vperm.xlu0 %442, %v300
        %v444 = vpop.permute.xlu0 %443
        %447 = vset.pattern.permute.xlu0 0
        %448 = vperm.xlu0 %447, %v301
        %v449 = vpop.permute.xlu0 %448
        %452 = vset.pattern.permute.xlu0 0
        %453 = vperm.xlu0 %452, %v302
        %v454 = vpop.permute.xlu0 %453
        %457 = vset.pattern.permute.xlu0 0
        %458 = vperm.xlu0 %457, %v303
        %v459 = vpop.permute.xlu0 %458
        %462 = vset.pattern.permute.xlu0 0
        %463 = vperm.xlu0 %462, %v304
        %v464 = vpop.permute.xlu0 %463
        %467 = vset.pattern.permute.xlu0 0
        %468 = vperm.xlu0 %467, %v305
        %v469 = vpop.permute.xlu0 %468
        %472 = vset.pattern.permute.xlu0 0
        %473 = vperm.xlu0 %472, %v306
        %v474 = vpop.permute.xlu0 %473
        %477 = vset.pattern.permute.xlu0 0
        %478 = vperm.xlu0 %477, %v307
        %v479 = vpop.permute.xlu0 %478
        %482 = vset.pattern.permute.xlu0 0
        %483 = vperm.xlu0 %482, %v308
        %v484 = vpop.permute.xlu0 %483
        %487 = vset.pattern.permute.xlu0 0
        %488 = vperm.xlu0 %487, %v309
        %v489 = vpop.permute.xlu0 %488
        %492 = vset.pattern.permute.xlu0 0
        %493 = vperm.xlu0 %492, %v310
        %v494 = vpop.permute.xlu0 %493
        %497 = vset.pattern.permute.xlu0 0
        %498 = vperm.xlu0 %497, %v311
        %v499 = vpop.permute.xlu0 %498
        %502 = vset.pattern.permute.xlu0 0
        %503 = vperm.xlu0 %502, %v312
        %v504 = vpop.permute.xlu0 %503
        %507 = vset.pattern.permute.xlu0 0
        %508 = vperm.xlu0 %507, %v313
        %v509 = vpop.permute.xlu0 %508
        %512 = vset.pattern.permute.xlu0 0
        %513 = vperm.xlu0 %512, %v314
        %v514 = vpop.permute.xlu0 %513
        %517 = vset.pattern.permute.xlu0 0
        %518 = vperm.xlu0 %517, %v315
        %v519 = vpop.permute.xlu0 %518
        %522 = vset.pattern.permute.xlu0 0
        %523 = vperm.xlu0 %522, %v316
        %v524 = vpop.permute.xlu0 %523
        %527 = vset.pattern.permute.xlu0 0
        %528 = vperm.xlu0 %527, %v317
        %v529 = vpop.permute.xlu0 %528
        %532 = vset.pattern.permute.xlu0 0
        %533 = vperm.xlu0 %532, %v318
        %v534 = vpop.permute.xlu0 %533
        %537 = vset.pattern.permute.xlu0 0
        %538 = vperm.xlu0 %537, %v319
        %v539 = vpop.permute.xlu0 %538
        %542 = vset.pattern.permute.xlu0 0
        %543 = vperm.xlu0 %542, %v320
        %v544 = vpop.permute.xlu0 %543
        %547 = vset.pattern.permute.xlu0 0
        %548 = vperm.xlu0 %547, %v321
        %v549 = vpop.permute.xlu0 %548
        %552 = vset.pattern.permute.xlu0 0
        %553 = vperm.xlu0 %552, %v322
        %v554 = vpop.permute.xlu0 %553
        %557 = vset.pattern.permute.xlu0 0
        %558 = vperm.xlu0 %557, %v323
        %v559 = vpop.permute.xlu0 %558
        %562 = vset.pattern.permute.xlu0 0
        %563 = vperm.xlu0 %562, %v324
        %v564 = vpop.permute.xlu0 %563
        %567 = vset.pattern.permute.xlu0 0
        %568 = vperm.xlu0 %567, %v325
        %v569 = vpop.permute.xlu0 %568
        %572 = vset.pattern.permute.xlu0 0
        %573 = vperm.xlu0 %572, %v326
        %v574 = vpop.permute.xlu0 %573
        %577 = vset.pattern.permute.xlu0 0
        %578 = vperm.xlu0 %577, %v327
        %v579 = vpop.permute.xlu0 %578
        %582 = vset.pattern.permute.xlu0 0
        %583 = vperm.xlu0 %582, %v328
        %v584 = vpop.permute.xlu0 %583
        %587 = vset.pattern.permute.xlu0 0
        %588 = vperm.xlu0 %587, %v329
        %v589 = vpop.permute.xlu0 %588
        %592 = vset.pattern.permute.xlu0 0
        %593 = vperm.xlu0 %592, %v330
        %v594 = vpop.permute.xlu0 %593
        %597 = vset.pattern.permute.xlu0 0
        %598 = vperm.xlu0 %597, %v331
        %v599 = vpop.permute.xlu0 %598
        %602 = vset.pattern.permute.xlu0 0
        %603 = vperm.xlu0 %602, %v332
        %v604 = vpop.permute.xlu0 %603
        %607 = vset.pattern.permute.xlu0 0
        %608 = vperm.xlu0 %607, %v333
        %v609 = vpop.permute.xlu0 %608
        %612 = vset.pattern.permute.xlu0 0
        %613 = vperm.xlu0 %612, %v334
        %v614 = vpop.permute.xlu0 %613
        %617 = vset.pattern.permute.xlu0 0
        %618 = vperm.xlu0 %617, %v335
        %v619 = vpop.permute.xlu0 %618
        %622 = vset.pattern.permute.xlu0 0
        %623 = vperm.xlu0 %622, %v336
        %v624 = vpop.permute.xlu0 %623
        %627 = vset.pattern.permute.xlu0 0
        %628 = vperm.xlu0 %627, %v337
        %v629 = vpop.permute.xlu0 %628
        %632 = vset.pattern.permute.xlu0 0
        %633 = vperm.xlu0 %632, %v338
        %v634 = vpop.permute.xlu0 %633
        %637 = vset.pattern.permute.xlu0 0
        %638 = vperm.xlu0 %637, %v339
        %v639 = vpop.permute.xlu0 %638
        %642 = vset.pattern.permute.xlu0 0
        %643 = vperm.xlu0 %642, %v340
        %v644 = vpop.permute.xlu0 %643
        %647 = vset.pattern.permute.xlu0 0
        %648 = vperm.xlu0 %647, %v341
        %v649 = vpop.permute.xlu0 %648
        %652 = vset.pattern.permute.xlu0 0
        %653 = vperm.xlu0 %652, %v342
        %v654 = vpop.permute.xlu0 %653
        %657 = vset.pattern.permute.xlu0 0
        %658 = vperm.xlu0 %657, %v343
        %v659 = vpop.permute.xlu0 %658
        %662 = vset.pattern.permute.xlu0 0
        %663 = vperm.xlu0 %662, %v344
        %v664 = vpop.permute.xlu0 %663
        %v667 = vlaneseq
        %v668 = vshrl.u32 %v667, 7
        %v669 = vsub.s32 0, %v668
        %v670 = vrot.slane %v345, %v669
        %v672 = vmul.f32 %v349, %v670
        %v673 = vmul.f32 %v354, %v670
        %v674 = vmul.f32 %v359, %v670
        %v675 = vmul.f32 %v364, %v670
        %v676 = vmul.f32 %v369, %v670
        %v677 = vmul.f32 %v374, %v670
        %v678 = vmul.f32 %v379, %v670
        %v679 = vmul.f32 %v384, %v670
        %v680 = vmul.f32 %v389, %v670
        %v681 = vmul.f32 %v394, %v670
        %v682 = vmul.f32 %v399, %v670
        %v683 = vmul.f32 %v404, %v670
        %v684 = vmul.f32 %v409, %v670
        %v685 = vmul.f32 %v414, %v670
        %v686 = vmul.f32 %v419, %v670
        %v687 = vmul.f32 %v424, %v670
        %v688 = vmul.f32 %v429, %v670
        %v689 = vmul.f32 %v434, %v670
        %v690 = vmul.f32 %v439, %v670
        %v691 = vmul.f32 %v444, %v670
        %v692 = vmul.f32 %v449, %v670
        %v693 = vmul.f32 %v454, %v670
        %v694 = vmul.f32 %v459, %v670
        %v695 = vmul.f32 %v464, %v670
        %v696 = vmul.f32 %v469, %v670
        %v697 = vmul.f32 %v474, %v670
        %v698 = vmul.f32 %v479, %v670
        %v699 = vmul.f32 %v484, %v670
        %v700 = vmul.f32 %v489, %v670
        %v701 = vmul.f32 %v494, %v670
        %v702 = vmul.f32 %v499, %v670
        %v703 = vmul.f32 %v504, %v670
        %v704 = vmul.f32 %v509, %v670
        %v705 = vmul.f32 %v514, %v670
        %v706 = vmul.f32 %v519, %v670
        %v707 = vmul.f32 %v524, %v670
        %v708 = vmul.f32 %v529, %v670
        %v709 = vmul.f32 %v534, %v670
        %v710 = vmul.f32 %v539, %v670
        %v711 = vmul.f32 %v544, %v670
        %v712 = vmul.f32 %v549, %v670
        %v713 = vmul.f32 %v554, %v670
        %v714 = vmul.f32 %v559, %v670
        %v715 = vmul.f32 %v564, %v670
        %v716 = vmul.f32 %v569, %v670
        %v717 = vmul.f32 %v574, %v670
        %v718 = vmul.f32 %v579, %v670
        %v719 = vmul.f32 %v584, %v670
        %v720 = vmul.f32 %v589, %v670
        %v721 = vmul.f32 %v594, %v670
        %v722 = vmul.f32 %v599, %v670
        %v723 = vmul.f32 %v604, %v670
        %v724 = vmul.f32 %v609, %v670
        %v725 = vmul.f32 %v614, %v670
        %v726 = vmul.f32 %v619, %v670
        %v727 = vmul.f32 %v624, %v670
        %v728 = vmul.f32 %v629, %v670
        %v729 = vmul.f32 %v634, %v670
        %v730 = vmul.f32 %v639, %v670
        %v731 = vmul.f32 %v644, %v670
        %v732 = vmul.f32 %v649, %v670
        %v733 = vmul.f32 %v654, %v670
        %v734 = vmul.f32 %v659, %v670
        %v735 = vmul.f32 %v664, %v670
        %v736 = vld [vmem:[%s2] sm:$0x1]
        %v738 = vlaneseq
        %v739 = vshrl.u32 %v738, 7
        %v740 = vsub.s32 0, %v739
        %v741 = vrot.slane %v736, %v740
        %v743 = vadd.f32 %v672, %v741
        %v744 = vadd.f32 %v673, %v741
        %v745 = vadd.f32 %v674, %v741
        %v746 = vadd.f32 %v675, %v741
        %v747 = vadd.f32 %v676, %v741
        %v748 = vadd.f32 %v677, %v741
        %v749 = vadd.f32 %v678, %v741
        %v750 = vadd.f32 %v679, %v741
        %v751 = vadd.f32 %v680, %v741
        %v752 = vadd.f32 %v681, %v741
        %v753 = vadd.f32 %v682, %v741
        %v754 = vadd.f32 %v683, %v741
        %v755 = vadd.f32 %v684, %v741
        %v756 = vadd.f32 %v685, %v741
        %v757 = vadd.f32 %v686, %v741
        %v758 = vadd.f32 %v687, %v741
        %v759 = vadd.f32 %v688, %v741
        %v760 = vadd.f32 %v689, %v741
        %v761 = vadd.f32 %v690, %v741
        %v762 = vadd.f32 %v691, %v741
        %v763 = vadd.f32 %v692, %v741
        %v764 = vadd.f32 %v693, %v741
        %v765 = vadd.f32 %v694, %v741
        %v766 = vadd.f32 %v695, %v741
        %v767 = vadd.f32 %v696, %v741
        %v768 = vadd.f32 %v697, %v741
        %v769 = vadd.f32 %v698, %v741
        %v770 = vadd.f32 %v699, %v741
        %v771 = vadd.f32 %v700, %v741
        %v772 = vadd.f32 %v701, %v741
        %v773 = vadd.f32 %v702, %v741
        %v774 = vadd.f32 %v703, %v741
        %v775 = vadd.f32 %v704, %v741
        %v776 = vadd.f32 %v705, %v741
        %v777 = vadd.f32 %v706, %v741
        %v778 = vadd.f32 %v707, %v741
        %v779 = vadd.f32 %v708, %v741
        %v780 = vadd.f32 %v709, %v741
        %v781 = vadd.f32 %v710, %v741
        %v782 = vadd.f32 %v711, %v741
        %v783 = vadd.f32 %v712, %v741
        %v784 = vadd.f32 %v713, %v741
        %v785 = vadd.f32 %v714, %v741
        %v786 = vadd.f32 %v715, %v741
        %v787 = vadd.f32 %v716, %v741
        %v788 = vadd.f32 %v717, %v741
        %v789 = vadd.f32 %v718, %v741
        %v790 = vadd.f32 %v719, %v741
        %v791 = vadd.f32 %v720, %v741
        %v792 = vadd.f32 %v721, %v741
        %v793 = vadd.f32 %v722, %v741
        %v794 = vadd.f32 %v723, %v741
        %v795 = vadd.f32 %v724, %v741
        %v796 = vadd.f32 %v725, %v741
        %v797 = vadd.f32 %v726, %v741
        %v798 = vadd.f32 %v727, %v741
        %v799 = vadd.f32 %v728, %v741
        %v800 = vadd.f32 %v729, %v741
        %v801 = vadd.f32 %v730, %v741
        %v802 = vadd.f32 %v731, %v741
        %v803 = vadd.f32 %v732, %v741
        %v804 = vadd.f32 %v733, %v741
        %v805 = vadd.f32 %v734, %v741
        %v806 = vadd.f32 %v735, %v741
        %v807 = vmax.f32 %v743, 0.0
        %v808 = vmax.f32 %v744, 0.0
        %v809 = vmax.f32 %v745, 0.0
        %v810 = vmax.f32 %v746, 0.0
        %v811 = vmax.f32 %v747, 0.0
        %v812 = vmax.f32 %v748, 0.0
        %v813 = vmax.f32 %v749, 0.0
        %v814 = vmax.f32 %v750, 0.0
        %v815 = vmax.f32 %v751, 0.0
        %v816 = vmax.f32 %v752, 0.0
        %v817 = vmax.f32 %v753, 0.0
        %v818 = vmax.f32 %v754, 0.0
        %v819 = vmax.f32 %v755, 0.0
        %v820 = vmax.f32 %v756, 0.0
        %v821 = vmax.f32 %v757, 0.0
        %v822 = vmax.f32 %v758, 0.0
        %v823 = vmax.f32 %v759, 0.0
        %v824 = vmax.f32 %v760, 0.0
        %v825 = vmax.f32 %v761, 0.0
        %v826 = vmax.f32 %v762, 0.0
        %v827 = vmax.f32 %v763, 0.0
        %v828 = vmax.f32 %v764, 0.0
        %v829 = vmax.f32 %v765, 0.0
        %v830 = vmax.f32 %v766, 0.0
        %v831 = vmax.f32 %v767, 0.0
        %v832 = vmax.f32 %v768, 0.0
        %v833 = vmax.f32 %v769, 0.0
        %v834 = vmax.f32 %v770, 0.0
        %v835 = vmax.f32 %v771, 0.0
        %v836 = vmax.f32 %v772, 0.0
        %v837 = vmax.f32 %v773, 0.0
        %v838 = vmax.f32 %v774, 0.0
        %v839 = vmax.f32 %v775, 0.0
        %v840 = vmax.f32 %v776, 0.0
        %v841 = vmax.f32 %v777, 0.0
        %v842 = vmax.f32 %v778, 0.0
        %v843 = vmax.f32 %v779, 0.0
        %v844 = vmax.f32 %v780, 0.0
        %v845 = vmax.f32 %v781, 0.0
        %v846 = vmax.f32 %v782, 0.0
        %v847 = vmax.f32 %v783, 0.0
        %v848 = vmax.f32 %v784, 0.0
        %v849 = vmax.f32 %v785, 0.0
        %v850 = vmax.f32 %v786, 0.0
        %v851 = vmax.f32 %v787, 0.0
        %v852 = vmax.f32 %v788, 0.0
        %v853 = vmax.f32 %v789, 0.0
        %v854 = vmax.f32 %v790, 0.0
        %v855 = vmax.f32 %v791, 0.0
        %v856 = vmax.f32 %v792, 0.0
        %v857 = vmax.f32 %v793, 0.0
        %v858 = vmax.f32 %v794, 0.0
        %v859 = vmax.f32 %v795, 0.0
        %v860 = vmax.f32 %v796, 0.0
        %v861 = vmax.f32 %v797, 0.0
        %v862 = vmax.f32 %v798, 0.0
        %v863 = vmax.f32 %v799, 0.0
        %v864 = vmax.f32 %v800, 0.0
        %v865 = vmax.f32 %v801, 0.0
        %v866 = vmax.f32 %v802, 0.0
        %v867 = vmax.f32 %v803, 0.0
        %v868 = vmax.f32 %v804, 0.0
        %v869 = vmax.f32 %v805, 0.0
        %v870 = vmax.f32 %v806, 0.0
        %v871 = vpack.c.bf16 %v808, %v807
        %v872 = vpack.c.bf16 %v810, %v809
        %v873 = vpack.c.bf16 %v812, %v811
        %v874 = vpack.c.bf16 %v814, %v813
        %v875 = vpack.c.bf16 %v816, %v815
        %v876 = vpack.c.bf16 %v818, %v817
        %v877 = vpack.c.bf16 %v820, %v819
        %v878 = vpack.c.bf16 %v822, %v821
        %v879 = vpack.c.bf16 %v824, %v823
        %v880 = vpack.c.bf16 %v826, %v825
        %v881 = vpack.c.bf16 %v828, %v827
        %v882 = vpack.c.bf16 %v830, %v829
        %v883 = vpack.c.bf16 %v832, %v831
        %v884 = vpack.c.bf16 %v834, %v833
        %v885 = vpack.c.bf16 %v836, %v835
        %v886 = vpack.c.bf16 %v838, %v837
        %v887 = vpack.c.bf16 %v840, %v839
        %v888 = vpack.c.bf16 %v842, %v841
        %v889 = vpack.c.bf16 %v844, %v843
        %v890 = vpack.c.bf16 %v846, %v845
        %v891 = vpack.c.bf16 %v848, %v847
        %v892 = vpack.c.bf16 %v850, %v849
        %v893 = vpack.c.bf16 %v852, %v851
        %v894 = vpack.c.bf16 %v854, %v853
        %v895 = vpack.c.bf16 %v856, %v855
        %v896 = vpack.c.bf16 %v858, %v857
        %v897 = vpack.c.bf16 %v860, %v859
        %v898 = vpack.c.bf16 %v862, %v861
        %v899 = vpack.c.bf16 %v864, %v863
        %v900 = vpack.c.bf16 %v866, %v865
        %v901 = vpack.c.bf16 %v868, %v867
        %v902 = vpack.c.bf16 %v870, %v869
        %v903 = vld [vmem:[%s3] sm:$0xf]
        %v904 = vld [vmem:[%s3 + $0x4] sm:$0xf]
        %v905 = vld [vmem:[%s3 + $0x8] sm:$0xf]
        %v906 = vld [vmem:[%s3 + $0xc] sm:$0xf]
        %v907 = vld [vmem:[%s3 + $0x10] sm:$0xf]
        %v908 = vld [vmem:[%s3 + $0x14] sm:$0xf]
        %v909 = vld [vmem:[%s3 + $0x18] sm:$0xf]
        %v910 = vld [vmem:[%s3 + $0x1c] sm:$0xf]
        %v911 = vld [vmem:[%s3 + $0x20] sm:$0xf]
        %v912 = vld [vmem:[%s3 + $0x24] sm:$0xf]
        %v913 = vld [vmem:[%s3 + $0x28] sm:$0xf]
        %v914 = vld [vmem:[%s3 + $0x2c] sm:$0xf]
        %v915 = vld [vmem:[%s3 + $0x30] sm:$0xf]
        %v916 = vld [vmem:[%s3 + $0x34] sm:$0xf]
        %v917 = vld [vmem:[%s3 + $0x38] sm:$0xf]
        %v918 = vld [vmem:[%s3 + $0x3c] sm:$0xf]
        %v919 = vld [vmem:[%s4] sm:$0x1]
        %v921 = vlaneseq
        %v922 = vshrl.u32 %v921, 7
        %v923 = vsub.s32 0, %v922
        %v924 = vrot.slane %v919, %v923
        %v942 = vunpack.c.l.b16 %v903
        %v943 = vunpack.c.l.b16 %v904
        %v944 = vunpack.c.l.b16 %v905
        %v945 = vunpack.c.l.b16 %v906
        %v946 = vunpack.c.l.b16 %v907
        %v947 = vunpack.c.l.b16 %v908
        %v948 = vunpack.c.l.b16 %v909
        %v949 = vunpack.c.l.b16 %v910
        %v950 = vunpack.c.l.b16 %v911
        %v951 = vunpack.c.l.b16 %v912
        %v952 = vunpack.c.l.b16 %v913
        %v953 = vunpack.c.l.b16 %v914
        %v954 = vunpack.c.l.b16 %v915
        %v955 = vunpack.c.l.b16 %v916
        %v956 = vunpack.c.l.b16 %v917
        %v957 = vunpack.c.l.b16 %v918
        %v958 = vpack.c.b16 %v943, %v942
        %v959 = vpack.c.b16 %v945, %v944
        %v960 = vpack.c.b16 %v947, %v946
        %v961 = vpack.c.b16 %v949, %v948
        %v962 = vpack.c.b16 %v951, %v950
        %v963 = vpack.c.b16 %v953, %v952
        %v964 = vpack.c.b16 %v955, %v954
        %v965 = vpack.c.b16 %v957, %v956
        %974 = vmatprep.subr.bf16.mxu0 0
        %975 = vmatpush1.bf16.msra.mxu0 %v958
        %976 = vmatprep.subr.bf16.mxu0 0
        %977 = vmatpush1.bf16.msra.mxu0 %v959
        %978 = vmatprep.subr.bf16.mxu0 0
        %979 = vmatpush1.bf16.msra.mxu0 %v960
        %980 = vmatprep.subr.bf16.mxu0 0
        %981 = vmatpush1.bf16.msra.mxu0 %v961
        %982 = vmatprep.subr.bf16.mxu0 0
        %983 = vmatpush1.bf16.msra.mxu0 %v962
        %984 = vmatprep.subr.bf16.mxu0 0
        %985 = vmatpush1.bf16.msra.mxu0 %v963
        %986 = vmatprep.subr.bf16.mxu0 0
        %987 = vmatpush1.bf16.msra.mxu0 %v964
        %988 = vmatprep.subr.bf16.mxu0 0
        %989 = vmatpush1.bf16.msra.mxu0 %v965
        %990 = vmatprep.subr.bf16.mxu0 0
        %991 = vmatpush1.bf16.msra.mxu0 0
        %992 = vmatprep.subr.bf16.mxu0 0
        %993 = vmatpush1.bf16.msra.mxu0 0
        %994 = vmatprep.subr.bf16.mxu0 0
        %995 = vmatpush1.bf16.msra.mxu0 0
        %996 = vmatprep.subr.bf16.mxu0 0
        %997 = vmatpush1.bf16.msra.mxu0 0
        %998 = vmatprep.subr.bf16.mxu0 0
        %999 = vmatpush1.bf16.msra.mxu0 0
        %1000 = vmatprep.subr.bf16.mxu0 0
        %1001 = vmatpush1.bf16.msra.mxu0 0
        %1002 = vmatprep.subr.bf16.mxu0 0
        %1003 = vmatpush1.bf16.msra.mxu0 0
        %1004 = vmatprep.subr.bf16.mxu0 0
        %1005 = vmatpush1.bf16.msra.mxu0 0
        %1006 = vmatprep.mubr.bf16.mxu0 0
        %1007 = vmatmul.mubr.bf16.gmra.mrb[0].mxu0 %v871
        %v1008 = vpop.f32.mrb[0].mxu0
        %v1009 = vadd.f32 %v924, %v1008
        %v1010 = vpop.f32.mrb[0].mxu0
        %v1011 = vpop.f32.mrb[0].mxu0
        %v1012 = vadd.f32 %v924, %v1011
        %v1013 = vpop.f32.mrb[0].mxu0
        %1014 = vmatprep.mubr.bf16.mxu0 0
        %1015 = vmatmul.mubr.bf16.gmra.mrb[0].mxu0 %v872
        %v1016 = vpop.f32.mrb[0].mxu0
        %v1017 = vadd.f32 %v924, %v1016
        %v1018 = vpop.f32.mrb[0].mxu0
        %v1019 = vpop.f32.mrb[0].mxu0
        %v1020 = vadd.f32 %v924, %v1019
        %v1021 = vpop.f32.mrb[0].mxu0
        %1022 = vmatprep.mubr.bf16.mxu0 0
        %1023 = vmatmul.mubr.bf16.gmra.mrb[0].mxu0 %v873
        %v1024 = vpop.f32.mrb[0].mxu0
        %v1025 = vadd.f32 %v924, %v1024
        %v1026 = vpop.f32.mrb[0].mxu0
        %v1027 = vpop.f32.mrb[0].mxu0
        %v1028 = vadd.f32 %v924, %v1027
        %v1029 = vpop.f32.mrb[0].mxu0
        %1030 = vmatprep.mubr.bf16.mxu0 0
        %1031 = vmatmul.mubr.bf16.gmra.mrb[0].mxu0 %v874
        %v1032 = vpop.f32.mrb[0].mxu0
        %v1033 = vadd.f32 %v924, %v1032
        %v1034 = vpop.f32.mrb[0].mxu0
        %v1035 = vpop.f32.mrb[0].mxu0
        %v1036 = vadd.f32 %v924, %v1035
        %v1037 = vpop.f32.mrb[0].mxu0
        %1038 = vmatprep.mubr.bf16.mxu0 0
        %1039 = vmatmul.mubr.bf16.gmra.mrb[0].mxu0 %v875
        %v1040 = vpop.f32.mrb[0].mxu0
        %v1041 = vadd.f32 %v924, %v1040
        %v1042 = vpop.f32.mrb[0].mxu0
        %v1043 = vpop.f32.mrb[0].mxu0
        %v1044 = vadd.f32 %v924, %v1043
        %v1045 = vpop.f32.mrb[0].mxu0
        %1046 = vmatprep.mubr.bf16.mxu0 0
        %1047 = vmatmul.mubr.bf16.gmra.mrb[0].mxu0 %v876
        %v1048 = vpop.f32.mrb[0].mxu0
        %v1049 = vadd.f32 %v924, %v1048
        %v1050 = vpop.f32.mrb[0].mxu0
        %v1051 = vpop.f32.mrb[0].mxu0
        %v1052 = vadd.f32 %v924, %v1051
        %v1053 = vpop.f32.mrb[0].mxu0
        %1054 = vmatprep.mubr.bf16.mxu0 0
        %1055 = vmatmul.mubr.bf16.gmra.mrb[0].mxu0 %v877
        %v1056 = vpop.f32.mrb[0].mxu0
        %v1057 = vadd.f32 %v924, %v1056
        %v1058 = vpop.f32.mrb[0].mxu0
        %v1059 = vpop.f32.mrb[0].mxu0
        %v1060 = vadd.f32 %v924, %v1059
        %v1061 = vpop.f32.mrb[0].mxu0
        %1062 = vmatprep.mubr.bf16.mxu0 0
        %1063 = vmatmul.mubr.bf16.gmra.mrb[0].mxu0 %v878
        %v1064 = vpop.f32.mrb[0].mxu0
        %v1065 = vadd.f32 %v924, %v1064
        %v1066 = vpop.f32.mrb[0].mxu0
        %v1067 = vpop.f32.mrb[0].mxu0
        %v1068 = vadd.f32 %v924, %v1067
        %v1069 = vpop.f32.mrb[0].mxu0
        %1070 = vmatprep.mubr.bf16.mxu0 0
        %1071 = vmatmul.mubr.bf16.gmra.mrb[0].mxu0 %v879
        %v1072 = vpop.f32.mrb[0].mxu0
        %v1073 = vadd.f32 %v924, %v1072
        %v1074 = vpop.f32.mrb[0].mxu0
        %v1075 = vpop.f32.mrb[0].mxu0
        %v1076 = vadd.f32 %v924, %v1075
        %v1077 = vpop.f32.mrb[0].mxu0
        %1078 = vmatprep.mubr.bf16.mxu0 0
        %1079 = vmatmul.mubr.bf16.gmra.mrb[0].mxu0 %v880
        %v1080 = vpop.f32.mrb[0].mxu0
        %v1081 = vadd.f32 %v924, %v1080
        %v1082 = vpop.f32.mrb[0].mxu0
        %v1083 = vpop.f32.mrb[0].mxu0
        %v1084 = vadd.f32 %v924, %v1083
        %v1085 = vpop.f32.mrb[0].mxu0
        %1086 = vmatprep.mubr.bf16.mxu0 0
        %1087 = vmatmul.mubr.bf16.gmra.mrb[0].mxu0 %v881
        %v1088 = vpop.f32.mrb[0].mxu0
        %v1089 = vadd.f32 %v924, %v1088
        %v1090 = vpop.f32.mrb[0].mxu0
        %v1091 = vpop.f32.mrb[0].mxu0
        %v1092 = vadd.f32 %v924, %v1091
        %v1093 = vpop.f32.mrb[0].mxu0
        %1094 = vmatprep.mubr.bf16.mxu0 0
        %1095 = vmatmul.mubr.bf16.gmra.mrb[0].mxu0 %v882
        %v1096 = vpop.f32.mrb[0].mxu0
        %v1097 = vadd.f32 %v924, %v1096
        %v1098 = vpop.f32.mrb[0].mxu0
        %v1099 = vpop.f32.mrb[0].mxu0
        %v1100 = vadd.f32 %v924, %v1099
        %v1101 = vpop.f32.mrb[0].mxu0
        %1102 = vmatprep.mubr.bf16.mxu0 0
        %1103 = vmatmul.mubr.bf16.gmra.mrb[0].mxu0 %v883
        %v1104 = vpop.f32.mrb[0].mxu0
        %v1105 = vadd.f32 %v924, %v1104
        %v1106 = vpop.f32.mrb[0].mxu0
        %v1107 = vpop.f32.mrb[0].mxu0
        %v1108 = vadd.f32 %v924, %v1107
        %v1109 = vpop.f32.mrb[0].mxu0
        %1110 = vmatprep.mubr.bf16.mxu0 0
        %1111 = vmatmul.mubr.bf16.gmra.mrb[0].mxu0 %v884
        %v1112 = vpop.f32.mrb[0].mxu0
        %v1113 = vadd.f32 %v924, %v1112
        %v1114 = vpop.f32.mrb[0].mxu0
        %v1115 = vpop.f32.mrb[0].mxu0
        %v1116 = vadd.f32 %v924, %v1115
        %v1117 = vpop.f32.mrb[0].mxu0
        %1118 = vmatprep.mubr.bf16.mxu0 0
        %1119 = vmatmul.mubr.bf16.gmra.mrb[0].mxu0 %v885
        %v1120 = vpop.f32.mrb[0].mxu0
        %v1121 = vadd.f32 %v924, %v1120
        %v1122 = vpop.f32.mrb[0].mxu0
        %v1123 = vpop.f32.mrb[0].mxu0
        %v1124 = vadd.f32 %v924, %v1123
        %v1125 = vpop.f32.mrb[0].mxu0
        %1126 = vmatprep.mubr.bf16.mxu0 0
        %1127 = vmatmul.mubr.bf16.gmra.mrb[0].mxu0 %v886
        %v1128 = vpop.f32.mrb[0].mxu0
        %v1129 = vadd.f32 %v924, %v1128
        %v1130 = vpop.f32.mrb[0].mxu0
        %v1131 = vpop.f32.mrb[0].mxu0
        %v1132 = vadd.f32 %v924, %v1131
        %v1133 = vpop.f32.mrb[0].mxu0
        %1134 = vmatprep.mubr.bf16.mxu0 0
        %1135 = vmatmul.mubr.bf16.gmra.mrb[0].mxu0 %v887
        %v1136 = vpop.f32.mrb[0].mxu0
        %v1137 = vadd.f32 %v924, %v1136
        %v1138 = vpop.f32.mrb[0].mxu0
        %v1139 = vpop.f32.mrb[0].mxu0
        %v1140 = vadd.f32 %v924, %v1139
        %v1141 = vpop.f32.mrb[0].mxu0
        %1142 = vmatprep.mubr.bf16.mxu0 0
        %1143 = vmatmul.mubr.bf16.gmra.mrb[0].mxu0 %v888
        %v1144 = vpop.f32.mrb[0].mxu0
        %v1145 = vadd.f32 %v924, %v1144
        %v1146 = vpop.f32.mrb[0].mxu0
        %v1147 = vpop.f32.mrb[0].mxu0
        %v1148 = vadd.f32 %v924, %v1147
        %v1149 = vpop.f32.mrb[0].mxu0
        %1150 = vmatprep.mubr.bf16.mxu0 0
        %1151 = vmatmul.mubr.bf16.gmra.mrb[0].mxu0 %v889
        %v1152 = vpop.f32.mrb[0].mxu0
        %v1153 = vadd.f32 %v924, %v1152
        %v1154 = vpop.f32.mrb[0].mxu0
        %v1155 = vpop.f32.mrb[0].mxu0
        %v1156 = vadd.f32 %v924, %v1155
        %v1157 = vpop.f32.mrb[0].mxu0
        %1158 = vmatprep.mubr.bf16.mxu0 0
        %1159 = vmatmul.mubr.bf16.gmra.mrb[0].mxu0 %v890
        %v1160 = vpop.f32.mrb[0].mxu0
        %v1161 = vadd.f32 %v924, %v1160
        %v1162 = vpop.f32.mrb[0].mxu0
        %v1163 = vpop.f32.mrb[0].mxu0
        %v1164 = vadd.f32 %v924, %v1163
        %v1165 = vpop.f32.mrb[0].mxu0
        %1166 = vmatprep.mubr.bf16.mxu0 0
        %1167 = vmatmul.mubr.bf16.gmra.mrb[0].mxu0 %v891
        %v1168 = vpop.f32.mrb[0].mxu0
        %v1169 = vadd.f32 %v924, %v1168
        %v1170 = vpop.f32.mrb[0].mxu0
        %v1171 = vpop.f32.mrb[0].mxu0
        %v1172 = vadd.f32 %v924, %v1171
        %v1173 = vpop.f32.mrb[0].mxu0
        %1174 = vmatprep.mubr.bf16.mxu0 0
        %1175 = vmatmul.mubr.bf16.gmra.mrb[0].mxu0 %v892
        %v1176 = vpop.f32.mrb[0].mxu0
        %v1177 = vadd.f32 %v924, %v1176
        %v1178 = vpop.f32.mrb[0].mxu0
        %v1179 = vpop.f32.mrb[0].mxu0
        %v1180 = vadd.f32 %v924, %v1179
        %v1181 = vpop.f32.mrb[0].mxu0
        %1182 = vmatprep.mubr.bf16.mxu0 0
        %1183 = vmatmul.mubr.bf16.gmra.mrb[0].mxu0 %v893
        %v1184 = vpop.f32.mrb[0].mxu0
        %v1185 = vadd.f32 %v924, %v1184
        %v1186 = vpop.f32.mrb[0].mxu0
        %v1187 = vpop.f32.mrb[0].mxu0
        %v1188 = vadd.f32 %v924, %v1187
        %v1189 = vpop.f32.mrb[0].mxu0
        %1190 = vmatprep.mubr.bf16.mxu0 0
        %1191 = vmatmul.mubr.bf16.gmra.mrb[0].mxu0 %v894
        %v1192 = vpop.f32.mrb[0].mxu0
        %v1193 = vadd.f32 %v924, %v1192
        %v1194 = vpop.f32.mrb[0].mxu0
        %v1195 = vpop.f32.mrb[0].mxu0
        %v1196 = vadd.f32 %v924, %v1195
        %v1197 = vpop.f32.mrb[0].mxu0
        %1198 = vmatprep.mubr.bf16.mxu0 0
        %1199 = vmatmul.mubr.bf16.gmra.mrb[0].mxu0 %v895
        %v1200 = vpop.f32.mrb[0].mxu0
        %v1201 = vadd.f32 %v924, %v1200
        %v1202 = vpop.f32.mrb[0].mxu0
        %v1203 = vpop.f32.mrb[0].mxu0
        %v1204 = vadd.f32 %v924, %v1203
        %v1205 = vpop.f32.mrb[0].mxu0
        %1206 = vmatprep.mubr.bf16.mxu0 0
        %1207 = vmatmul.mubr.bf16.gmra.mrb[0].mxu0 %v896
        %v1208 = vpop.f32.mrb[0].mxu0
        %v1209 = vadd.f32 %v924, %v1208
        %v1210 = vpop.f32.mrb[0].mxu0
        %v1211 = vpop.f32.mrb[0].mxu0
        %v1212 = vadd.f32 %v924, %v1211
        %v1213 = vpop.f32.mrb[0].mxu0
        %1214 = vmatprep.mubr.bf16.mxu0 0
        %1215 = vmatmul.mubr.bf16.gmra.mrb[0].mxu0 %v897
        %v1216 = vpop.f32.mrb[0].mxu0
        %v1217 = vadd.f32 %v924, %v1216
        %v1218 = vpop.f32.mrb[0].mxu0
        %v1219 = vpop.f32.mrb[0].mxu0
        %v1220 = vadd.f32 %v924, %v1219
        %v1221 = vpop.f32.mrb[0].mxu0
        %1222 = vmatprep.mubr.bf16.mxu0 0
        %1223 = vmatmul.mubr.bf16.gmra.mrb[0].mxu0 %v898
        %v1224 = vpop.f32.mrb[0].mxu0
        %v1225 = vadd.f32 %v924, %v1224
        %v1226 = vpop.f32.mrb[0].mxu0
        %v1227 = vpop.f32.mrb[0].mxu0
        %v1228 = vadd.f32 %v924, %v1227
        %v1229 = vpop.f32.mrb[0].mxu0
        %1230 = vmatprep.mubr.bf16.mxu0 0
        %1231 = vmatmul.mubr.bf16.gmra.mrb[0].mxu0 %v899
        %v1232 = vpop.f32.mrb[0].mxu0
        %v1233 = vadd.f32 %v924, %v1232
        %v1234 = vpop.f32.mrb[0].mxu0
        %v1235 = vpop.f32.mrb[0].mxu0
        %v1236 = vadd.f32 %v924, %v1235
        %v1237 = vpop.f32.mrb[0].mxu0
        %1238 = vmatprep.mubr.bf16.mxu0 0
        %1239 = vmatmul.mubr.bf16.gmra.mrb[0].mxu0 %v900
        %v1240 = vpop.f32.mrb[0].mxu0
        %v1241 = vadd.f32 %v924, %v1240
        %v1242 = vpop.f32.mrb[0].mxu0
        %v1243 = vpop.f32.mrb[0].mxu0
        %v1244 = vadd.f32 %v924, %v1243
        %v1245 = vpop.f32.mrb[0].mxu0
        %1246 = vmatprep.mubr.bf16.mxu0 0
        %1247 = vmatmul.mubr.bf16.gmra.mrb[0].mxu0 %v901
        %v1248 = vpop.f32.mrb[0].mxu0
        %v1249 = vadd.f32 %v924, %v1248
        %v1250 = vpop.f32.mrb[0].mxu0
        %v1251 = vpop.f32.mrb[0].mxu0
        %v1252 = vadd.f32 %v924, %v1251
        %v1253 = vpop.f32.mrb[0].mxu0
        %1254 = vmatprep.mubr.bf16.mxu0 0
        %1255 = vmatmul.mubr.bf16.gmra.mrb[0].mxu0 %v902
        %v1256 = vpop.f32.mrb[0].mxu0
        %v1257 = vadd.f32 %v924, %v1256
        %v1258 = vpop.f32.mrb[0].mxu0
        %v1259 = vpop.f32.mrb[0].mxu0
        %v1260 = vadd.f32 %v924, %v1259
        %v1261 = vpop.f32.mrb[0].mxu0
        %1262 = vdwg.mxu0
        %v1263 = vmax.f32 %v1009, 0.0
        %v1264 = vmax.f32 %v1012, 0.0
        %v1265 = vmax.f32 %v1017, 0.0
        %v1266 = vmax.f32 %v1020, 0.0
        %v1267 = vmax.f32 %v1025, 0.0
        %v1268 = vmax.f32 %v1028, 0.0
        %v1269 = vmax.f32 %v1033, 0.0
        %v1270 = vmax.f32 %v1036, 0.0
        %v1271 = vmax.f32 %v1041, 0.0
        %v1272 = vmax.f32 %v1044, 0.0
        %v1273 = vmax.f32 %v1049, 0.0
        %v1274 = vmax.f32 %v1052, 0.0
        %v1275 = vmax.f32 %v1057, 0.0
        %v1276 = vmax.f32 %v1060, 0.0
        %v1277 = vmax.f32 %v1065, 0.0
        %v1278 = vmax.f32 %v1068, 0.0
        %v1279 = vmax.f32 %v1073, 0.0
        %v1280 = vmax.f32 %v1076, 0.0
        %v1281 = vmax.f32 %v1081, 0.0
        %v1282 = vmax.f32 %v1084, 0.0
        %v1283 = vmax.f32 %v1089, 0.0
        %v1284 = vmax.f32 %v1092, 0.0
        %v1285 = vmax.f32 %v1097, 0.0
        %v1286 = vmax.f32 %v1100, 0.0
        %v1287 = vmax.f32 %v1105, 0.0
        %v1288 = vmax.f32 %v1108, 0.0
        %v1289 = vmax.f32 %v1113, 0.0
        %v1290 = vmax.f32 %v1116, 0.0
        %v1291 = vmax.f32 %v1121, 0.0
        %v1292 = vmax.f32 %v1124, 0.0
        %v1293 = vmax.f32 %v1129, 0.0
        %v1294 = vmax.f32 %v1132, 0.0
        %v1295 = vmax.f32 %v1137, 0.0
        %v1296 = vmax.f32 %v1140, 0.0
        %v1297 = vmax.f32 %v1145, 0.0
        %v1298 = vmax.f32 %v1148, 0.0
        %v1299 = vmax.f32 %v1153, 0.0
        %v1300 = vmax.f32 %v1156, 0.0
        %v1301 = vmax.f32 %v1161, 0.0
        %v1302 = vmax.f32 %v1164, 0.0
        %v1303 = vmax.f32 %v1169, 0.0
        %v1304 = vmax.f32 %v1172, 0.0
        %v1305 = vmax.f32 %v1177, 0.0
        %v1306 = vmax.f32 %v1180, 0.0
        %v1307 = vmax.f32 %v1185, 0.0
        %v1308 = vmax.f32 %v1188, 0.0
        %v1309 = vmax.f32 %v1193, 0.0
        %v1310 = vmax.f32 %v1196, 0.0
        %v1311 = vmax.f32 %v1201, 0.0
        %v1312 = vmax.f32 %v1204, 0.0
        %v1313 = vmax.f32 %v1209, 0.0
        %v1314 = vmax.f32 %v1212, 0.0
        %v1315 = vmax.f32 %v1217, 0.0
        %v1316 = vmax.f32 %v1220, 0.0
        %v1317 = vmax.f32 %v1225, 0.0
        %v1318 = vmax.f32 %v1228, 0.0
        %v1319 = vmax.f32 %v1233, 0.0
        %v1320 = vmax.f32 %v1236, 0.0
        %v1321 = vmax.f32 %v1241, 0.0
        %v1322 = vmax.f32 %v1244, 0.0
        %v1323 = vmax.f32 %v1249, 0.0
        %v1324 = vmax.f32 %v1252, 0.0
        %v1325 = vmax.f32 %v1257, 0.0
        %v1326 = vmax.f32 %v1260, 0.0
        %v1327 = vld [vmem:[%s5] sm:$0x1]
        %v1329 = vlaneseq
        %v1330 = vshrl.u32 %v1329, 7
        %v1331 = vsub.s32 0, %v1330
        %v1332 = vrot.slane %v1327, %v1331
        %v1334 = vmul.f32 %v1263, %v1332
        %v1335 = vmul.f32 %v1264, %v1332
        %v1336 = vmul.f32 %v1265, %v1332
        %v1337 = vmul.f32 %v1266, %v1332
        %v1338 = vmul.f32 %v1267, %v1332
        %v1339 = vmul.f32 %v1268, %v1332
        %v1340 = vmul.f32 %v1269, %v1332
        %v1341 = vmul.f32 %v1270, %v1332
        %v1342 = vmul.f32 %v1271, %v1332
        %v1343 = vmul.f32 %v1272, %v1332
        %v1344 = vmul.f32 %v1273, %v1332
        %v1345 = vmul.f32 %v1274, %v1332
        %v1346 = vmul.f32 %v1275, %v1332
        %v1347 = vmul.f32 %v1276, %v1332
        %v1348 = vmul.f32 %v1277, %v1332
        %v1349 = vmul.f32 %v1278, %v1332
        %v1350 = vmul.f32 %v1279, %v1332
        %v1351 = vmul.f32 %v1280, %v1332
        %v1352 = vmul.f32 %v1281, %v1332
        %v1353 = vmul.f32 %v1282, %v1332
        %v1354 = vmul.f32 %v1283, %v1332
        %v1355 = vmul.f32 %v1284, %v1332
        %v1356 = vmul.f32 %v1285, %v1332
        %v1357 = vmul.f32 %v1286, %v1332
        %v1358 = vmul.f32 %v1287, %v1332
        %v1359 = vmul.f32 %v1288, %v1332
        %v1360 = vmul.f32 %v1289, %v1332
        %v1361 = vmul.f32 %v1290, %v1332
        %v1362 = vmul.f32 %v1291, %v1332
        %v1363 = vmul.f32 %v1292, %v1332
        %v1364 = vmul.f32 %v1293, %v1332
        %v1365 = vmul.f32 %v1294, %v1332
        %v1366 = vmul.f32 %v1295, %v1332
        %v1367 = vmul.f32 %v1296, %v1332
        %v1368 = vmul.f32 %v1297, %v1332
        %v1369 = vmul.f32 %v1298, %v1332
        %v1370 = vmul.f32 %v1299, %v1332
        %v1371 = vmul.f32 %v1300, %v1332
        %v1372 = vmul.f32 %v1301, %v1332
        %v1373 = vmul.f32 %v1302, %v1332
        %v1374 = vmul.f32 %v1303, %v1332
        %v1375 = vmul.f32 %v1304, %v1332
        %v1376 = vmul.f32 %v1305, %v1332
        %v1377 = vmul.f32 %v1306, %v1332
        %v1378 = vmul.f32 %v1307, %v1332
        %v1379 = vmul.f32 %v1308, %v1332
        %v1380 = vmul.f32 %v1309, %v1332
        %v1381 = vmul.f32 %v1310, %v1332
        %v1382 = vmul.f32 %v1311, %v1332
        %v1383 = vmul.f32 %v1312, %v1332
        %v1384 = vmul.f32 %v1313, %v1332
        %v1385 = vmul.f32 %v1314, %v1332
        %v1386 = vmul.f32 %v1315, %v1332
        %v1387 = vmul.f32 %v1316, %v1332
        %v1388 = vmul.f32 %v1317, %v1332
        %v1389 = vmul.f32 %v1318, %v1332
        %v1390 = vmul.f32 %v1319, %v1332
        %v1391 = vmul.f32 %v1320, %v1332
        %v1392 = vmul.f32 %v1321, %v1332
        %v1393 = vmul.f32 %v1322, %v1332
        %v1394 = vmul.f32 %v1323, %v1332
        %v1395 = vmul.f32 %v1324, %v1332
        %v1396 = vmul.f32 %v1325, %v1332
        %v1397 = vmul.f32 %v1326, %v1332
        %s1398 = sld [smem:[#allocation2]]
        %1399 = vxpose.xlu0.b32.start [1/16] %v1334, 128
        %1400 = vxpose.xlu0.b32.cont [2/16] %v1335, 128
        %1401 = vxpose.xlu0.b32.cont [3/16] %v1336, 128
        %1402 = vxpose.xlu0.b32.cont [4/16] %v1337, 128
        %1403 = vxpose.xlu0.b32.cont [5/16] %v1338, 128
        %1404 = vxpose.xlu0.b32.cont [6/16] %v1339, 128
        %1405 = vxpose.xlu0.b32.cont [7/16] %v1340, 128
        %1406 = vxpose.xlu0.b32.cont [8/16] %v1341, 128
        %1407 = vxpose.xlu0.b32.cont [9/16] %v1342, 128
        %1408 = vxpose.xlu0.b32.cont [10/16] %v1343, 128
        %1409 = vxpose.xlu0.b32.cont [11/16] %v1344, 128
        %1410 = vxpose.xlu0.b32.cont [12/16] %v1345, 128
        %1411 = vxpose.xlu0.b32.cont [13/16] %v1346, 128
        %1412 = vxpose.xlu0.b32.cont [14/16] %v1347, 128
        %1413 = vxpose.xlu0.b32.cont [15/16] %v1348, 128
        %1414 = vxpose.xlu0.b32.end [16/16] %v1349, 128
        %v1415 = vpop.trf.xlu0
        %v1416 = vpop.trf.xlu0
        %v1417 = vpop.trf.xlu0
        %v1418 = vpop.trf.xlu0
        %v1419 = vpop.trf.xlu0
        %v1420 = vpop.trf.xlu0
        %v1421 = vpop.trf.xlu0
        %v1422 = vpop.trf.xlu0
        %v1423 = vpop.trf.xlu0
        %v1424 = vpop.trf.xlu0
        %v1425 = vpop.trf.xlu0
        %v1426 = vpop.trf.xlu0
        %v1427 = vpop.trf.xlu0
        %v1428 = vpop.trf.xlu0
        %v1429 = vpop.trf.xlu0
        %v1430 = vpop.trf.xlu0
        %v1431 = vadd.f32 %v1415, %v1416
        %v1432 = vadd.f32 %v1431, %v1417
        %v1433 = vadd.f32 %v1432, %v1418
        %v1434 = vadd.f32 %v1433, %v1419
        %v1435 = vadd.f32 %v1434, %v1420
        %v1436 = vadd.f32 %v1435, %v1421
        %v1437 = vadd.f32 %v1436, %v1422
        %v1438 = vadd.f32 %v1437, %v1423
        %v1439 = vadd.f32 %v1438, %v1424
        %v1440 = vadd.f32 %v1439, %v1425
        %v1441 = vadd.f32 %v1440, %v1426
        %v1442 = vadd.f32 %v1441, %v1427
        %v1443 = vadd.f32 %v1442, %v1428
        %v1444 = vadd.f32 %v1443, %v1429
        %v1445 = vadd.f32 %v1444, %v1430
        %v1446 = vrot.slane %v1445, 4
        %v1447 = vadd.f32 %v1445, %v1446
        %v1448 = vrot.slane %v1447, 2
        %v1449 = vadd.f32 %v1447, %v1448
        %v1450 = vrot.slane %v1449, 1
        %v1451 = vadd.f32 %v1449, %v1450
        %v1452 = vstv %s1398
        %v1453 = vadd.f32 %v1451, %v1452
        %1454 = vst [vmem:[%s273] sm:$0x1] %v1453
        %1455 = vxpose.xlu0.b32.start [1/16] %v1350, 128
        %1456 = vxpose.xlu0.b32.cont [2/16] %v1351, 128
        %1457 = vxpose.xlu0.b32.cont [3/16] %v1352, 128
        %1458 = vxpose.xlu0.b32.cont [4/16] %v1353, 128
        %1459 = vxpose.xlu0.b32.cont [5/16] %v1354, 128
        %1460 = vxpose.xlu0.b32.cont [6/16] %v1355, 128
        %1461 = vxpose.xlu0.b32.cont [7/16] %v1356, 128
        %1462 = vxpose.xlu0.b32.cont [8/16] %v1357, 128
        %1463 = vxpose.xlu0.b32.cont [9/16] %v1358, 128
        %1464 = vxpose.xlu0.b32.cont [10/16] %v1359, 128
        %1465 = vxpose.xlu0.b32.cont [11/16] %v1360, 128
        %1466 = vxpose.xlu0.b32.cont [12/16] %v1361, 128
        %1467 = vxpose.xlu0.b32.cont [13/16] %v1362, 128
        %1468 = vxpose.xlu0.b32.cont [14/16] %v1363, 128
        %1469 = vxpose.xlu0.b32.cont [15/16] %v1364, 128
        %1470 = vxpose.xlu0.b32.end [16/16] %v1365, 128
        %v1471 = vpop.trf.xlu0
        %v1472 = vpop.trf.xlu0
        %v1473 = vpop.trf.xlu0
        %v1474 = vpop.trf.xlu0
        %v1475 = vpop.trf.xlu0
        %v1476 = vpop.trf.xlu0
        %v1477 = vpop.trf.xlu0
        %v1478 = vpop.trf.xlu0
        %v1479 = vpop.trf.xlu0
        %v1480 = vpop.trf.xlu0
        %v1481 = vpop.trf.xlu0
        %v1482 = vpop.trf.xlu0
        %v1483 = vpop.trf.xlu0
        %v1484 = vpop.trf.xlu0
        %v1485 = vpop.trf.xlu0
        %v1486 = vpop.trf.xlu0
        %v1487 = vadd.f32 %v1471, %v1472
        %v1488 = vadd.f32 %v1487, %v1473
        %v1489 = vadd.f32 %v1488, %v1474
        %v1490 = vadd.f32 %v1489, %v1475
        %v1491 = vadd.f32 %v1490, %v1476
        %v1492 = vadd.f32 %v1491, %v1477
        %v1493 = vadd.f32 %v1492, %v1478
        %v1494 = vadd.f32 %v1493, %v1479
        %v1495 = vadd.f32 %v1494, %v1480
        %v1496 = vadd.f32 %v1495, %v1481
        %v1497 = vadd.f32 %v1496, %v1482
        %v1498 = vadd.f32 %v1497, %v1483
        %v1499 = vadd.f32 %v1498, %v1484
        %v1500 = vadd.f32 %v1499, %v1485
        %v1501 = vadd.f32 %v1500, %v1486
        %v1502 = vrot.slane %v1501, 4
        %v1503 = vadd.f32 %v1501, %v1502
        %v1504 = vrot.slane %v1503, 2
        %v1505 = vadd.f32 %v1503, %v1504
        %v1506 = vrot.slane %v1505, 1
        %v1507 = vadd.f32 %v1505, %v1506
        %v1508 = vadd.f32 %v1507, %v1452
        %1509 = vst [vmem:[%s273 + $0x1] sm:$0x1] %v1508
        %1510 = vxpose.xlu0.b32.start [1/16] %v1366, 128
        %1511 = vxpose.xlu0.b32.cont [2/16] %v1367, 128
        %1512 = vxpose.xlu0.b32.cont [3/16] %v1368, 128
        %1513 = vxpose.xlu0.b32.cont [4/16] %v1369, 128
        %1514 = vxpose.xlu0.b32.cont [5/16] %v1370, 128
        %1515 = vxpose.xlu0.b32.cont [6/16] %v1371, 128
        %1516 = vxpose.xlu0.b32.cont [7/16] %v1372, 128
        %1517 = vxpose.xlu0.b32.cont [8/16] %v1373, 128
        %1518 = vxpose.xlu0.b32.cont [9/16] %v1374, 128
        %1519 = vxpose.xlu0.b32.cont [10/16] %v1375, 128
        %1520 = vxpose.xlu0.b32.cont [11/16] %v1376, 128
        %1521 = vxpose.xlu0.b32.cont [12/16] %v1377, 128
        %1522 = vxpose.xlu0.b32.cont [13/16] %v1378, 128
        %1523 = vxpose.xlu0.b32.cont [14/16] %v1379, 128
        %1524 = vxpose.xlu0.b32.cont [15/16] %v1380, 128
        %1525 = vxpose.xlu0.b32.end [16/16] %v1381, 128
        %v1526 = vpop.trf.xlu0
        %v1527 = vpop.trf.xlu0
        %v1528 = vpop.trf.xlu0
        %v1529 = vpop.trf.xlu0
        %v1530 = vpop.trf.xlu0
        %v1531 = vpop.trf.xlu0
        %v1532 = vpop.trf.xlu0
        %v1533 = vpop.trf.xlu0
        %v1534 = vpop.trf.xlu0
        %v1535 = vpop.trf.xlu0
        %v1536 = vpop.trf.xlu0
        %v1537 = vpop.trf.xlu0
        %v1538 = vpop.trf.xlu0
        %v1539 = vpop.trf.xlu0
        %v1540 = vpop.trf.xlu0
        %v1541 = vpop.trf.xlu0
        %v1542 = vadd.f32 %v1526, %v1527
        %v1543 = vadd.f32 %v1542, %v1528
        %v1544 = vadd.f32 %v1543, %v1529
        %v1545 = vadd.f32 %v1544, %v1530
        %v1546 = vadd.f32 %v1545, %v1531
        %v1547 = vadd.f32 %v1546, %v1532
        %v1548 = vadd.f32 %v1547, %v1533
        %v1549 = vadd.f32 %v1548, %v1534
        %v1550 = vadd.f32 %v1549, %v1535
        %v1551 = vadd.f32 %v1550, %v1536
        %v1552 = vadd.f32 %v1551, %v1537
        %v1553 = vadd.f32 %v1552, %v1538
        %v1554 = vadd.f32 %v1553, %v1539
        %v1555 = vadd.f32 %v1554, %v1540
        %v1556 = vadd.f32 %v1555, %v1541
        %v1557 = vrot.slane %v1556, 4
        %v1558 = vadd.f32 %v1556, %v1557
        %v1559 = vrot.slane %v1558, 2
        %v1560 = vadd.f32 %v1558, %v1559
        %v1561 = vrot.slane %v1560, 1
        %v1562 = vadd.f32 %v1560, %v1561
        %v1563 = vadd.f32 %v1562, %v1452
        %1564 = vst [vmem:[%s273 + $0x2] sm:$0x1] %v1563
        %1565 = vxpose.xlu0.b32.start [1/16] %v1382, 128
        %1566 = vxpose.xlu0.b32.cont [2/16] %v1383, 128
        %1567 = vxpose.xlu0.b32.cont [3/16] %v1384, 128
        %1568 = vxpose.xlu0.b32.cont [4/16] %v1385, 128
        %1569 = vxpose.xlu0.b32.cont [5/16] %v1386, 128
        %1570 = vxpose.xlu0.b32.cont [6/16] %v1387, 128
        %1571 = vxpose.xlu0.b32.cont [7/16] %v1388, 128
        %1572 = vxpose.xlu0.b32.cont [8/16] %v1389, 128
        %1573 = vxpose.xlu0.b32.cont [9/16] %v1390, 128
        %1574 = vxpose.xlu0.b32.cont [10/16] %v1391, 128
        %1575 = vxpose.xlu0.b32.cont [11/16] %v1392, 128
        %1576 = vxpose.xlu0.b32.cont [12/16] %v1393, 128
        %1577 = vxpose.xlu0.b32.cont [13/16] %v1394, 128
        %1578 = vxpose.xlu0.b32.cont [14/16] %v1395, 128
        %1579 = vxpose.xlu0.b32.cont [15/16] %v1396, 128
        %1580 = vxpose.xlu0.b32.end [16/16] %v1397, 128
        %v1581 = vpop.trf.xlu0
        %v1582 = vpop.trf.xlu0
        %v1583 = vpop.trf.xlu0
        %v1584 = vpop.trf.xlu0
        %v1585 = vpop.trf.xlu0
        %v1586 = vpop.trf.xlu0
        %v1587 = vpop.trf.xlu0
        %v1588 = vpop.trf.xlu0
        %v1589 = vpop.trf.xlu0
        %v1590 = vpop.trf.xlu0
        %v1591 = vpop.trf.xlu0
        %v1592 = vpop.trf.xlu0
        %v1593 = vpop.trf.xlu0
        %v1594 = vpop.trf.xlu0
        %v1595 = vpop.trf.xlu0
        %v1596 = vpop.trf.xlu0
        %v1597 = vadd.f32 %v1581, %v1582
        %v1598 = vadd.f32 %v1597, %v1583
        %v1599 = vadd.f32 %v1598, %v1584
        %v1600 = vadd.f32 %v1599, %v1585
        %v1601 = vadd.f32 %v1600, %v1586
        %v1602 = vadd.f32 %v1601, %v1587
        %v1603 = vadd.f32 %v1602, %v1588
        %v1604 = vadd.f32 %v1603, %v1589
        %v1605 = vadd.f32 %v1604, %v1590
        %v1606 = vadd.f32 %v1605, %v1591
        %v1607 = vadd.f32 %v1606, %v1592
        %v1608 = vadd.f32 %v1607, %v1593
        %v1609 = vadd.f32 %v1608, %v1594
        %v1610 = vadd.f32 %v1609, %v1595
        %v1611 = vadd.f32 %v1610, %v1596
        %v1612 = vrot.slane %v1611, 4
        %v1613 = vadd.f32 %v1611, %v1612
        %v1614 = vrot.slane %v1613, 2
        %v1615 = vadd.f32 %v1613, %v1614
        %v1616 = vrot.slane %v1615, 1
        %v1617 = vadd.f32 %v1615, %v1616
        %v1618 = vadd.f32 %v1617, %v1452
        %1619 = vst [vmem:[%s273 + $0x3] sm:$0x1] %v1618
        %s1620 = sand.u32 %s182, 1
        %s1621 = scalar_lea.sflag [#allocation4], %s1620
        %s1622 = sand.u32 %s182, 1
        %s1623 = smul.addr %s1622, 4
        %s1624 = scalar_lea.vmem [#allocation3], %s1623
        // Predicated region
        $region49: #{tpu_custom_call.1} parent=47 // pred_check
          %p1625 = pneg %p192
        $region50: #{tpu_custom_call.1} parent=47 // pred_check_branch
          %1627 = sbr.rel (%p1625) target = $region52
        $region51: #{tpu_custom_call.1} parent=47 // pred_region
          %s1629 = ssub.s32 64, 64
          %1630 = vsyncadd %s1621, %s1629
          %s1631 = smul.addr %s22, 64
          %s1632 = scalar_lea.hbm %s7, %s1631
          %s1634 = sshll.u32 %s1624, 4
          %s1635 = int_to_ptr.vmem [resolvable:$true] %s1634
          %1637 = dma.vmem_to_hbm [thread:$0]  %s1635, 64, %s1632, %s1621
        $region52: #{tpu_custom_call.1} parent=47 // pred_fallthru
          _
      $region48: #{tpu_custom_call.1} parent=5 // pred_fallthru
        _
      %p1638 = scmp.le.s32.totalorder 2, %s17
      // Predicated region
      $region53: #{tpu_custom_call.1} parent=5 // pred_check
        %p1639 = pneg %p1638
      $region54: #{tpu_custom_call.1} parent=5 // pred_check_branch
        %1641 = sbr.rel (%p1639) target = $region56
      $region55: #{tpu_custom_call.1} parent=5 // pred_region
        %s1642 = ssub.s32 %s17, 2
        // Predicated region
        $region57: #{tpu_custom_call.1} parent=55 // pred_check
          %p1643 = pneg %p198
        $region58: #{tpu_custom_call.1} parent=55 // pred_check_branch
          %1645 = sbr.rel (%p1643) target = $region60
        $region59: #{tpu_custom_call.1} parent=55 // pred_region
          %s1646 = sand.u32 %s183, 1
          %s1647 = scalar_lea.sflag [#allocation4], %s1646
          %s1648 = sand.u32 %s183, 1
          %s1649 = smul.addr %s1648, 4
          %s1650 = scalar_lea.vmem [#allocation3], %s1649
          %1651 = dma.done %s1647, 64
        $region60: #{tpu_custom_call.1} parent=55 // pred_fallthru
          _
      $region56: #{tpu_custom_call.1} parent=5 // pred_fallthru
        _
    $region6: #{tpu_custom_call.1} parent=1 // loop_footer
      %s21 = sadd.s32 1, %s17
    $region7: #{tpu_custom_call.1} parent=1 // loop_footer_branch
      %16 = sbr.rel target = $region3
    $region8: #{tpu_custom_call.1} parent=1 // loop_exit
      _
    %1652 = vsyncpa [#allocation4], 1
    %s1653 = scalar_lea.sflag [#allocation4], 1
    %1654 = vsyncpa %s1653, 1

</llo_original>
